<compile_context>
chip_gen: v5e
topology: v5e:2x2
jax: 0.10.0
libtpu: 0.0.40
codegen_flags: <defaults>
</compile_context>

<pallas_src>
import functools

import jax
import jax.numpy as jnp
from jax import lax
from jax.experimental import pallas as pl
from jax.experimental.pallas import tpu as pltpu


def _round_up(a, m):
    return (a + m - 1) // m * m


def _rnn_block_kernel(bp, h1, h2,
                      gx_ref, w_hh_l_ref, w_g_ref, b_g_ref, gamma_ref, beta_ref,
                      o_ref,
                      h_l_ref, c_l_ref, h_g_ref):
    rows = gx_ref.shape[0]          # tc * bp
    tc = rows // bp

    # Carries live in VMEM scratch and persist across the (serial) time grid.
    @pl.when(pl.program_id(0) == 0)
    def _init():
        h_l_ref[...] = jnp.zeros_like(h_l_ref)
        c_l_ref[...] = jnp.zeros_like(c_l_ref)
        h_g_ref[...] = jnp.zeros_like(h_g_ref)

    # Hoisted weights / broadcast bias (no per-iteration broadcast_in_dim).
    w_hh_l = w_hh_l_ref[...]                                   # bf16 (H1, G1)
    w_g = w_g_ref[...]                                         # bf16 (H1+H2, G2)
    b_g = jnp.broadcast_to(b_g_ref[...], (bp, b_g_ref.shape[1]))

    def step(t, carry):
        h_l, c_l, h_g = carry
        row = pl.multiple_of(t * bp, bp)

        # ---- LSTM cell (packed gates i|f|g|o; input-side matmul precomputed) ----
        gates = gx_ref[pl.ds(row, bp), :] + jnp.dot(
            h_l.astype(jnp.bfloat16), w_hh_l, preferred_element_type=jnp.float32)
        if_sl = jax.nn.sigmoid(gates[:, :2 * h1])              # i|f in one EUP slab
        i_g = if_sl[:, :h1]
        f_g = if_sl[:, h1:]
        g_g = jnp.tanh(gates[:, 2 * h1:3 * h1])
        o_g = jax.nn.sigmoid(gates[:, 3 * h1:4 * h1])
        c_l = f_g * c_l + i_g * g_g
        h_l = o_g * jnp.tanh(c_l)

        y = jnp.maximum(h_l, 0.0)       # ReLU; dropout p=0.0 -> identity

        # ---- GRU cell: single fused matmul over [y, h_g] ----
        # columns of w_g/b_g: [ r|z (stacked input+hidden) | n_input | n_hidden ]
        yg = jnp.concatenate([y, h_g], axis=-1).astype(jnp.bfloat16)
        g = jnp.dot(yg, w_g, preferred_element_type=jnp.float32) + b_g
        rz = jax.nn.sigmoid(g[:, :2 * h2])                     # r|z slab
        r = rz[:, :h2]
        z = rz[:, h2:2 * h2]
        n = jnp.tanh(g[:, 2 * h2:3 * h2] + r * g[:, 3 * h2:4 * h2])
        h_g = (1.0 - z) * n + z * h_g

        o_ref[pl.ds(row, bp), :] = h_g      # raw state; epilogue after the loop
        return h_l, c_l, h_g

    carry0 = (h_l_ref[...], c_l_ref[...], h_g_ref[...])
    h_l, c_l, h_g = lax.fori_loop(0, tc, step, carry0, unroll=min(tc, 8))
    h_l_ref[...] = h_l
    c_l_ref[...] = c_l
    h_g_ref[...] = h_g

    # ReLU + LayerNorm epilogue, vectorized over the whole chunk, in place on
    # o_ref (centered two-pass variance; o_ref is exactly h2 lanes wide).
    y2 = jnp.maximum(o_ref[...], 0.0)
    mu = jnp.mean(y2, axis=-1, keepdims=True)
    d = y2 - mu
    var = jnp.mean(d * d, axis=-1, keepdims=True)
    o_ref[...] = d * lax.rsqrt(var + 1e-5) * gamma_ref[...] + beta_ref[...]


def rnn_block_forward(x, params, *, tc=512):
    """x: (B, T, in_channels) batch-first, like the PyTorch module."""
    B, T, Din = x.shape
    H1 = params["w_hh_l"].shape[0]
    H2 = params["w_hh_g"].shape[0]
    f32, bf16 = jnp.float32, jnp.bfloat16

    Bp = _round_up(B, 8)              # f32 sublane tile (extra batch rows are
                                      # nearly free up to the MXU row tile)
    G1 = _round_up(4 * H1, 128)       # packed LSTM gate width (single pad)
    G2 = _round_up(4 * H2, 128)       # fused GRU matmul width [r|z|n_in|n_hid]

    tc = max(1, min(tc, T))           # time chunk; default sized for long T
    Tp = _round_up(T, tc)

    # Time-major, batch/time-padded input, flattened to rows so the streamed
    # operand is a 2-D (8,128)-aligned slab.
    x_tm = jnp.zeros((Tp, Bp, Din), f32)
    x_tm = x_tm.at[:T, :B, :].set(jnp.transpose(x, (1, 0, 2)).astype(f32))
    x2d = x_tm.reshape(Tp * Bp, Din)

    # Input-side LSTM matmul done once here with full M (off the serial chain,
    # kept f32 for accuracy); bias folded in; streamed into the kernel.
    gx = jnp.dot(x2d, params["w_ih_l"].astype(f32),
                 preferred_element_type=f32) + params["b_l"].astype(f32)
    gx = jnp.pad(gx, ((0, 0), (0, G1 - 4 * H1)))

    # Recurrent LSTM weight: contiguous gates, single lane pad, bf16 for MXU.
    w_hh_l = jnp.pad(params["w_hh_l"].astype(f32),
                     ((0, 0), (0, G1 - 4 * H1))).astype(bf16)

    # Fused GRU weight (H1+H2, G2): one matmul per step.
    w_ih_g = params["w_ih_g"].astype(f32)          # (H1, 3*H2)
    w_hh_g = params["w_hh_g"].astype(f32)          # (H2, 3*H2)
    w_g = jnp.zeros((H1 + H2, G2), f32)
    w_g = w_g.at[:H1, :2 * H2].set(w_ih_g[:, :2 * H2])       # r|z input part
    w_g = w_g.at[H1:, :2 * H2].set(w_hh_g[:, :2 * H2])       # r|z hidden part
    w_g = w_g.at[:H1, 2 * H2:3 * H2].set(w_ih_g[:, 2 * H2:])  # n input part
    w_g = w_g.at[H1:, 3 * H2:4 * H2].set(w_hh_g[:, 2 * H2:])  # n hidden part
    w_g = w_g.astype(bf16)

    # GRU biases packed to match the fused columns (r|z biases pre-summed).
    b_ig = params["b_ig"].astype(f32)
    b_hg = params["b_hg"].astype(f32)
    b_g = jnp.zeros((1, G2), f32)
    b_g = b_g.at[:, :2 * H2].set(b_ig[:, :2 * H2] + b_hg[:, :2 * H2])
    b_g = b_g.at[:, 2 * H2:3 * H2].set(b_ig[:, 2 * H2:])
    b_g = b_g.at[:, 3 * H2:4 * H2].set(b_hg[:, 2 * H2:])

    gamma = params["gamma"].astype(f32)
    beta = params["beta"].astype(f32)

    inputs = (gx, w_hh_l, w_g, b_g, gamma, beta)

    # Grid-invariant operands use a constant index_map so they stay VMEM
    # resident.  (pipeline_mode=pl.Buffered(1) would drop their second buffer;
    # negligible at this H, so omitted for portability.)
    in_specs = [pl.BlockSpec((tc * Bp, G1), lambda i: (i, 0))] + [
        pl.BlockSpec(w.shape, lambda i: (0, 0)) for w in inputs[1:]
    ]
    out_specs = pl.BlockSpec((tc * Bp, H2), lambda i: (i, 0))

    # VMEM budget: streamed in/out blocks are double-buffered; weights small.
    block_bytes = 2 * tc * Bp * (G1 + H2) * 4
    weight_bytes = 2 * (w_hh_l.size + w_g.size) * 2 \
        + 2 * (b_g.size + gamma.size + beta.size) * 4
    scratch_bytes = Bp * (2 * H1 + H2) * 4
    vmem_bytes = block_bytes + weight_bytes + scratch_bytes + (8 << 20)
    vmem_bytes = int(min(max(vmem_bytes, 32 << 20), 48 << 20))  # v7x-safe cap

    # TODO(synk): for B >= ~16 add a leading "parallel" batch-chunk grid axis
    # (per-chunk carries) so v7x's second TensorCore splits the batch; the
    # demo batch (B=2 -> Bp=8) cannot be split.
    kernel = functools.partial(_rnn_block_kernel, Bp, H1, H2)

    out2d = pl.pallas_call(
        kernel,
        out_shape=jax.ShapeDtypeStruct((Tp * Bp, H2), f32),
        grid_spec=pltpu.PrefetchScalarGridSpec(
            num_scalar_prefetch=0,
            grid=(Tp // tc,),
            in_specs=in_specs,
            out_specs=out_specs,
            scratch_shapes=[
                pltpu.VMEM((Bp, H1), f32),     # h_l carry
                pltpu.VMEM((Bp, H1), f32),     # c_l carry
                pltpu.VMEM((Bp, H2), f32),     # h_g carry
            ]),
        compiler_params=pltpu.CompilerParams(
            dimension_semantics=("arbitrary",),   # time recurrence is serial
            vmem_limit_bytes=vmem_bytes),
    )(*inputs)

    out_tm = out2d.reshape(Tp, Bp, H2)[:T, :B, :]
    return jnp.transpose(out_tm, (1, 0, 2))          # (B, T, H2)


def rnn_block_reference(x, params):
    """Pure-JAX f32 reference mirroring the PyTorch forward, for validation."""
    H1 = params["w_hh_l"].shape[0]
    H2 = params["w_hh_g"].shape[0]
    B = x.shape[0]

    def step(carry, x_t):
        h_l, c_l, h_g = carry
        gates = x_t @ params["w_ih_l"] + h_l @ params["w_hh_l"] + params["b_l"]
        i_g = jax.nn.sigmoid(gates[:, 0 * H1:1 * H1])
        f_g = jax.nn.sigmoid(gates[:, 1 * H1:2 * H1])
        g_g = jnp.tanh(gates[:, 2 * H1:3 * H1])
        o_g = jax.nn.sigmoid(gates[:, 3 * H1:4 * H1])
        c_l = f_g * c_l + i_g * g_g
        h_l = o_g * jnp.tanh(c_l)
        y = jnp.maximum(h_l, 0.0)
        gi = y @ params["w_ih_g"] + params["b_ig"]
        gh = h_g @ params["w_hh_g"] + params["b_hg"]
        r = jax.nn.sigmoid(gi[:, 0 * H2:1 * H2] + gh[:, 0 * H2:1 * H2])
        z = jax.nn.sigmoid(gi[:, 1 * H2:2 * H2] + gh[:, 1 * H2:2 * H2])
        n = jnp.tanh(gi[:, 2 * H2:3 * H2] + r * gh[:, 2 * H2:3 * H2])
        h_g = (1.0 - z) * n + z * h_g
        y2 = jnp.maximum(h_g, 0.0)
        mu = jnp.mean(y2, axis=-1, keepdims=True)
        var = jnp.mean((y2 - mu) ** 2, axis=-1, keepdims=True)
        y_n = (y2 - mu) * lax.rsqrt(var + 1e-5) * params["gamma"] + params["beta"]
        return (h_l, c_l, h_g), y_n

    init = (jnp.zeros((B, H1), jnp.float32),
            jnp.zeros((B, H1), jnp.float32),
            jnp.zeros((B, H2), jnp.float32))
    _, ys = lax.scan(step, init, jnp.transpose(x, (1, 0, 2)))
    return jnp.transpose(ys, (1, 0, 2))


def init_params(key, in_channels, in_between_channels, out_channels):
    """Deterministic init matching PyTorch LSTM/GRU U(-1/sqrt(H), 1/sqrt(H))."""
    H1, H2 = in_between_channels, out_channels
    ks = jax.random.split(key, 8)

    def u(k, shape, bound):
        return jax.random.uniform(k, shape, jnp.float32, -bound, bound)

    b1 = 1.0 / (H1 ** 0.5)
    b2 = 1.0 / (H2 ** 0.5)

    # PyTorch stores (4H, Din) / (4H, H); we generate transposed directly.
    w_ih_l = u(ks[0], (in_channels, 4 * H1), b1)
    w_hh_l = u(ks[1], (H1, 4 * H1), b1)
    b_l = u(ks[2], (1, 4 * H1), b1) + u(ks[3], (1, 4 * H1), b1)   # b_ih + b_hh

    w_ih_g = u(ks[4], (H1, 3 * H2), b2)
    w_hh_g = u(ks[5], (H2, 3 * H2), b2)
    b_ig = u(ks[6], (1, 3 * H2), b2)
    b_hg = u(ks[7], (1, 3 * H2), b2)   # kept separate: n uses r*(W_hn h + b_hn)

    gamma = jnp.ones((1, H2), jnp.float32)    # nn.LayerNorm default init
    beta = jnp.zeros((1, H2), jnp.float32)

    return dict(w_ih_l=w_ih_l, w_hh_l=w_hh_l, b_l=b_l,
                w_ih_g=w_ih_g, w_hh_g=w_hh_g, b_ig=b_ig, b_hg=b_hg,
                gamma=gamma, beta=beta)


if __name__ == "__main__":
    B, T = 2, 8
    in_channels, in_between_channels, out_channels = 4, 32, 32

    root = jax.random.PRNGKey(0)
    k_x, k_p = jax.random.split(root)
    x = jax.random.normal(k_x, (B, T, in_channels), jnp.float32)
    params = init_params(k_p, in_channels, in_between_channels, out_channels)

    # tc=4 here only to exercise the multi-chunk carry path at this toy T;
    # realistic sequence lengths should use the (much larger) default tc.
    y = rnn_block_forward(x, params, tc=4)
    jax.block_until_ready(y)

    y_ref = rnn_block_reference(x, params)
    max_err = float(jnp.max(jnp.abs(y - y_ref)))
    assert y.shape == (B, T, out_channels), y.shape
    # bf16 MXU operands on the recurrent path vs. the pure-f32 reference:
    # tolerance loosened accordingly (per review guidance).
    assert max_err < 1e-1, f"mismatch vs reference: {max_err}"

    print("KERNEL_OK")
</pallas_src>

<mosaic_0001>
module attributes {stable_mosaic.version = 11 : i64} {
  func.func @_rnn_block_kernel(%arg0: i32, %arg1: memref<32x128xf32, #tpu.memory_space<vmem>>, %arg2: memref<32x128xbf16, #tpu.memory_space<vmem>>, %arg3: memref<64x128xbf16, #tpu.memory_space<vmem>>, %arg4: memref<1x128xf32, #tpu.memory_space<vmem>>, %arg5: memref<1x32xf32, #tpu.memory_space<vmem>>, %arg6: memref<1x32xf32, #tpu.memory_space<vmem>>, %arg7: memref<32x32xf32, #tpu.memory_space<vmem>>, %arg8: memref<8x32xf32, #tpu.memory_space<vmem>>, %arg9: memref<8x32xf32, #tpu.memory_space<vmem>>, %arg10: memref<8x32xf32, #tpu.memory_space<vmem>>) attributes {dimension_semantics = [#tpu.dimension_semantics<arbitrary>], iteration_bounds = array<i64: 2>, scalar_prefetch = 0 : i64, scratch_operands = 3 : i64, tpu.core_type = #tpu.core_type<tc>, window_params = [{transform_indices = @transform_0, window_bounds = array<i64: 32, 128>}, {pipeline_mode = #tpu.pipeline_mode<synchronous>, transform_indices = @transform_1, window_bounds = array<i64: 32, 128>}, {pipeline_mode = #tpu.pipeline_mode<synchronous>, transform_indices = @transform_2, window_bounds = array<i64: 64, 128>}, {pipeline_mode = #tpu.pipeline_mode<synchronous>, transform_indices = @transform_3, window_bounds = array<i64: 1, 128>}, {pipeline_mode = #tpu.pipeline_mode<synchronous>, transform_indices = @transform_4, window_bounds = array<i64: 1, 32>}, {pipeline_mode = #tpu.pipeline_mode<synchronous>, transform_indices = @transform_5, window_bounds = array<i64: 1, 32>}, {transform_indices = @transform_6, window_bounds = array<i64: 32, 32>}]} {
    %c0_i32 = arith.constant 0 : i32
    %0 = arith.cmpi eq, %arg0, %c0_i32 : i32
    %1 = arith.extui %0 : i1 to i32
    %c0_i32_0 = arith.constant 0 : i32
    %2 = arith.cmpi ne, %1, %c0_i32_0 : i32
    scf.if %2 {
      %cst_71 = arith.constant 0.000000e+00 : f32
      %256 = vector.broadcast %cst_71 : f32 to vector<8x32xf32>
      %c0_72 = arith.constant 0 : index
      %c0_73 = arith.constant 0 : index
      %257 = vector.load %arg8[%c0_72, %c0_73] : memref<8x32xf32, #tpu.memory_space<vmem>>, vector<8x32xf32>
      tpu.vector_store %arg8[%c0_72, %c0_73], %256 {strides = array<i32>} : memref<8x32xf32, #tpu.memory_space<vmem>>, vector<8x32xf32>,
      %cst_74 = arith.constant 0.000000e+00 : f32
      %258 = vector.broadcast %cst_74 : f32 to vector<8x32xf32>
      %c0_75 = arith.constant 0 : index
      %c0_76 = arith.constant 0 : index
      %259 = vector.load %arg9[%c0_75, %c0_76] : memref<8x32xf32, #tpu.memory_space<vmem>>, vector<8x32xf32>
      tpu.vector_store %arg9[%c0_75, %c0_76], %258 {strides = array<i32>} : memref<8x32xf32, #tpu.memory_space<vmem>>, vector<8x32xf32>,
      %cst_77 = arith.constant 0.000000e+00 : f32
      %260 = vector.broadcast %cst_77 : f32 to vector<8x32xf32>
      %c0_78 = arith.constant 0 : index
      %c0_79 = arith.constant 0 : index
      %261 = vector.load %arg10[%c0_78, %c0_79] : memref<8x32xf32, #tpu.memory_space<vmem>>, vector<8x32xf32>
      tpu.vector_store %arg10[%c0_78, %c0_79], %260 {strides = array<i32>} : memref<8x32xf32, #tpu.memory_space<vmem>>, vector<8x32xf32>,
    } else {
    }
    %c0 = arith.constant 0 : index
    %c0_1 = arith.constant 0 : index
    %3 = vector.load %arg2[%c0, %c0_1] : memref<32x128xbf16, #tpu.memory_space<vmem>>, vector<32x128xbf16>
    %c0_2 = arith.constant 0 : index
    %c0_3 = arith.constant 0 : index
    %4 = vector.load %arg3[%c0_2, %c0_3] : memref<64x128xbf16, #tpu.memory_space<vmem>>, vector<64x128xbf16>
    %c0_4 = arith.constant 0 : index
    %c0_5 = arith.constant 0 : index
    %5 = vector.load %arg4[%c0_4, %c0_5] : memref<1x128xf32, #tpu.memory_space<vmem>>, vector<1x128xf32>
    %6 = vector.shape_cast %5 : vector<1x128xf32> to vector<1x128xf32>
    %7 = vector.broadcast %6 : vector<1x128xf32> to vector<8x128xf32>
    %c0_6 = arith.constant 0 : index
    %c0_7 = arith.constant 0 : index
    %8 = vector.load %arg8[%c0_6, %c0_7] : memref<8x32xf32, #tpu.memory_space<vmem>>, vector<8x32xf32>
    %c0_8 = arith.constant 0 : index
    %c0_9 = arith.constant 0 : index
    %9 = vector.load %arg9[%c0_8, %c0_9] : memref<8x32xf32, #tpu.memory_space<vmem>>, vector<8x32xf32>
    %c0_10 = arith.constant 0 : index
    %c0_11 = arith.constant 0 : index
    %10 = vector.load %arg10[%c0_10, %c0_11] : memref<8x32xf32, #tpu.memory_space<vmem>>, vector<8x32xf32>
    %c0_i32_12 = arith.constant 0 : i32
    %c8_i32 = arith.constant 8 : i32
    %11 = arith.muli %c0_i32_12, %c8_i32 : i32
    %12 = tpu.assume_multiple %11, 8 : i32
    %13 = arith.index_cast %12 : i32 to index
    %c0_13 = arith.constant 0 : index
    %14 = vector.load %arg1[%13, %c0_13] : memref<32x128xf32, #tpu.memory_space<vmem>>, vector<8x128xf32>
    %15 = arith.truncf %8 : vector<8x32xf32> to vector<8x32xbf16>
    %cst = arith.constant dense<0.000000e+00> : vector<8x128xf32>
    %16 = tpu.matmul %15, %3, %cst {dimension_numbers = #tpu.dot_dimension_numbers<[1], [0], [0], [1], [0, 0, 1, 1], [], []>} : vector<8x32xbf16>, vector<32x128xbf16>, vector<8x128xf32> -> vector<8x128xf32>
    %17 = arith.addf %14, %16 : vector<8x128xf32>
    %18 = vector.extract_strided_slice %17 {offsets = [0, 0], sizes = [8, 64], strides = [1, 1]} : vector<8x128xf32> to vector<8x64xf32>
    %19 = arith.negf %18 : vector<8x64xf32>
    %20 = math.exp %19 : vector<8x64xf32>
    %cst_14 = arith.constant 1.000000e+00 : f32
    %21 = vector.broadcast %cst_14 : f32 to vector<8x64xf32>
    %22 = arith.addf %21, %20 : vector<8x64xf32>
    %23 = arith.divf %21, %22 : vector<8x64xf32>
    %24 = vector.extract_strided_slice %23 {offsets = [0, 0], sizes = [8, 32], strides = [1, 1]} : vector<8x64xf32> to vector<8x32xf32>
    %25 = vector.extract_strided_slice %23 {offsets = [0, 32], sizes = [8, 32], strides = [1, 1]} : vector<8x64xf32> to vector<8x32xf32>
    %26 = vector.extract_strided_slice %17 {offsets = [0, 64], sizes = [8, 32], strides = [1, 1]} : vector<8x128xf32> to vector<8x32xf32>
    %27 = math.tanh %26 : vector<8x32xf32>
    %28 = vector.extract_strided_slice %17 {offsets = [0, 96], sizes = [8, 32], strides = [1, 1]} : vector<8x128xf32> to vector<8x32xf32>
    %29 = arith.negf %28 : vector<8x32xf32>
    %30 = math.exp %29 : vector<8x32xf32>
    %cst_15 = arith.constant 1.000000e+00 : f32
    %31 = vector.broadcast %cst_15 : f32 to vector<8x32xf32>
    %32 = arith.addf %31, %30 : vector<8x32xf32>
    %33 = arith.divf %31, %32 : vector<8x32xf32>
    %34 = arith.mulf %25, %9 : vector<8x32xf32>
    %35 = arith.mulf %24, %27 : vector<8x32xf32>
    %36 = arith.addf %34, %35 : vector<8x32xf32>
    %37 = math.tanh %36 : vector<8x32xf32>
    %38 = arith.mulf %33, %37 : vector<8x32xf32>
    %cst_16 = arith.constant 0.000000e+00 : f32
    %39 = vector.broadcast %cst_16 : f32 to vector<8x32xf32>
    %40 = arith.maximumf %38, %39 : vector<8x32xf32>
    %41 = tpu.concatenate %40, %10 in 1 : vector<8x32xf32>, vector<8x32xf32> -> vector<8x64xf32>
    %42 = arith.truncf %41 : vector<8x64xf32> to vector<8x64xbf16>
    %cst_17 = arith.constant dense<0.000000e+00> : vector<8x128xf32>
    %43 = tpu.matmul %42, %4, %cst_17 {dimension_numbers = #tpu.dot_dimension_numbers<[1], [0], [0], [1], [0, 0, 1, 1], [], []>} : vector<8x64xbf16>, vector<64x128xbf16>, vector<8x128xf32> -> vector<8x128xf32>
    %44 = arith.addf %43, %7 : vector<8x128xf32>
    %45 = vector.extract_strided_slice %44 {offsets = [0, 0], sizes = [8, 64], strides = [1, 1]} : vector<8x128xf32> to vector<8x64xf32>
    %46 = arith.negf %45 : vector<8x64xf32>
    %47 = math.exp %46 : vector<8x64xf32>
    %cst_18 = arith.constant 1.000000e+00 : f32
    %48 = vector.broadcast %cst_18 : f32 to vector<8x64xf32>
    %49 = arith.addf %48, %47 : vector<8x64xf32>
    %50 = arith.divf %48, %49 : vector<8x64xf32>
    %51 = vector.extract_strided_slice %50 {offsets = [0, 0], sizes = [8, 32], strides = [1, 1]} : vector<8x64xf32> to vector<8x32xf32>
    %52 = vector.extract_strided_slice %50 {offsets = [0, 32], sizes = [8, 32], strides = [1, 1]} : vector<8x64xf32> to vector<8x32xf32>
    %53 = vector.extract_strided_slice %44 {offsets = [0, 64], sizes = [8, 32], strides = [1, 1]} : vector<8x128xf32> to vector<8x32xf32>
    %54 = vector.extract_strided_slice %44 {offsets = [0, 96], sizes = [8, 32], strides = [1, 1]} : vector<8x128xf32> to vector<8x32xf32>
    %55 = arith.mulf %51, %54 : vector<8x32xf32>
    %56 = arith.addf %53, %55 : vector<8x32xf32>
    %57 = math.tanh %56 : vector<8x32xf32>
    %cst_19 = arith.constant 1.000000e+00 : f32
    %58 = vector.broadcast %cst_19 : f32 to vector<8x32xf32>
    %59 = arith.subf %58, %52 : vector<8x32xf32>
    %60 = arith.mulf %59, %57 : vector<8x32xf32>
    %61 = arith.mulf %52, %10 : vector<8x32xf32>
    %62 = arith.addf %60, %61 : vector<8x32xf32>
    %63 = arith.index_cast %12 : i32 to index
    %c0_20 = arith.constant 0 : index
    %64 = vector.load %arg7[%63, %c0_20] : memref<32x32xf32, #tpu.memory_space<vmem>>, vector<8x32xf32>
    tpu.vector_store %arg7[%63, %c0_20], %62 {strides = array<i32>} : memref<32x32xf32, #tpu.memory_space<vmem>>, vector<8x32xf32>,
    %c1_i32 = arith.constant 1 : i32
    %c8_i32_21 = arith.constant 8 : i32
    %65 = arith.muli %c1_i32, %c8_i32_21 : i32
    %66 = tpu.assume_multiple %65, 8 : i32
    %67 = arith.index_cast %66 : i32 to index
    %c0_22 = arith.constant 0 : index
    %68 = vector.load %arg1[%67, %c0_22] : memref<32x128xf32, #tpu.memory_space<vmem>>, vector<8x128xf32>
    %69 = arith.truncf %38 : vector<8x32xf32> to vector<8x32xbf16>
    %cst_23 = arith.constant dense<0.000000e+00> : vector<8x128xf32>
    %70 = tpu.matmul %69, %3, %cst_23 {dimension_numbers = #tpu.dot_dimension_numbers<[1], [0], [0], [1], [0, 0, 1, 1], [], []>} : vector<8x32xbf16>, vector<32x128xbf16>, vector<8x128xf32> -> vector<8x128xf32>
    %71 = arith.addf %68, %70 : vector<8x128xf32>
    %72 = vector.extract_strided_slice %71 {offsets = [0, 0], sizes = [8, 64], strides = [1, 1]} : vector<8x128xf32> to vector<8x64xf32>
    %73 = arith.negf %72 : vector<8x64xf32>
    %74 = math.exp %73 : vector<8x64xf32>
    %cst_24 = arith.constant 1.000000e+00 : f32
    %75 = vector.broadcast %cst_24 : f32 to vector<8x64xf32>
    %76 = arith.addf %75, %74 : vector<8x64xf32>
    %77 = arith.divf %75, %76 : vector<8x64xf32>
    %78 = vector.extract_strided_slice %77 {offsets = [0, 0], sizes = [8, 32], strides = [1, 1]} : vector<8x64xf32> to vector<8x32xf32>
    %79 = vector.extract_strided_slice %77 {offsets = [0, 32], sizes = [8, 32], strides = [1, 1]} : vector<8x64xf32> to vector<8x32xf32>
    %80 = vector.extract_strided_slice %71 {offsets = [0, 64], sizes = [8, 32], strides = [1, 1]} : vector<8x128xf32> to vector<8x32xf32>
    %81 = math.tanh %80 : vector<8x32xf32>
    %82 = vector.extract_strided_slice %71 {offsets = [0, 96], sizes = [8, 32], strides = [1, 1]} : vector<8x128xf32> to vector<8x32xf32>
    %83 = arith.negf %82 : vector<8x32xf32>
    %84 = math.exp %83 : vector<8x32xf32>
    %cst_25 = arith.constant 1.000000e+00 : f32
    %85 = vector.broadcast %cst_25 : f32 to vector<8x32xf32>
    %86 = arith.addf %85, %84 : vector<8x32xf32>
    %87 = arith.divf %85, %86 : vector<8x32xf32>
    %88 = arith.mulf %79, %36 : vector<8x32xf32>
    %89 = arith.mulf %78, %81 : vector<8x32xf32>
    %90 = arith.addf %88, %89 : vector<8x32xf32>
    %91 = math.tanh %90 : vector<8x32xf32>
    %92 = arith.mulf %87, %91 : vector<8x32xf32>
    %cst_26 = arith.constant 0.000000e+00 : f32
    %93 = vector.broadcast %cst_26 : f32 to vector<8x32xf32>
    %94 = arith.maximumf %92, %93 : vector<8x32xf32>
    %95 = tpu.concatenate %94, %62 in 1 : vector<8x32xf32>, vector<8x32xf32> -> vector<8x64xf32>
    %96 = arith.truncf %95 : vector<8x64xf32> to vector<8x64xbf16>
    %cst_27 = arith.constant dense<0.000000e+00> : vector<8x128xf32>
    %97 = tpu.matmul %96, %4, %cst_27 {dimension_numbers = #tpu.dot_dimension_numbers<[1], [0], [0], [1], [0, 0, 1, 1], [], []>} : vector<8x64xbf16>, vector<64x128xbf16>, vector<8x128xf32> -> vector<8x128xf32>
    %98 = arith.addf %97, %7 : vector<8x128xf32>
    %99 = vector.extract_strided_slice %98 {offsets = [0, 0], sizes = [8, 64], strides = [1, 1]} : vector<8x128xf32> to vector<8x64xf32>
    %100 = arith.negf %99 : vector<8x64xf32>
    %101 = math.exp %100 : vector<8x64xf32>
    %cst_28 = arith.constant 1.000000e+00 : f32
    %102 = vector.broadcast %cst_28 : f32 to vector<8x64xf32>
    %103 = arith.addf %102, %101 : vector<8x64xf32>
    %104 = arith.divf %102, %103 : vector<8x64xf32>
    %105 = vector.extract_strided_slice %104 {offsets = [0, 0], sizes = [8, 32], strides = [1, 1]} : vector<8x64xf32> to vector<8x32xf32>
    %106 = vector.extract_strided_slice %104 {offsets = [0, 32], sizes = [8, 32], strides = [1, 1]} : vector<8x64xf32> to vector<8x32xf32>
    %107 = vector.extract_strided_slice %98 {offsets = [0, 64], sizes = [8, 32], strides = [1, 1]} : vector<8x128xf32> to vector<8x32xf32>
    %108 = vector.extract_strided_slice %98 {offsets = [0, 96], sizes = [8, 32], strides = [1, 1]} : vector<8x128xf32> to vector<8x32xf32>
    %109 = arith.mulf %105, %108 : vector<8x32xf32>
    %110 = arith.addf %107, %109 : vector<8x32xf32>
    %111 = math.tanh %110 : vector<8x32xf32>
    %cst_29 = arith.constant 1.000000e+00 : f32
    %112 = vector.broadcast %cst_29 : f32 to vector<8x32xf32>
    %113 = arith.subf %112, %106 : vector<8x32xf32>
    %114 = arith.mulf %113, %111 : vector<8x32xf32>
    %115 = arith.mulf %106, %62 : vector<8x32xf32>
    %116 = arith.addf %114, %115 : vector<8x32xf32>
    %117 = arith.index_cast %66 : i32 to index
    %c0_30 = arith.constant 0 : index
    %118 = vector.load %arg7[%117, %c0_30] : memref<32x32xf32, #tpu.memory_space<vmem>>, vector<8x32xf32>
    tpu.vector_store %arg7[%117, %c0_30], %116 {strides = array<i32>} : memref<32x32xf32, #tpu.memory_space<vmem>>, vector<8x32xf32>,
    %c2_i32 = arith.constant 2 : i32
    %c8_i32_31 = arith.constant 8 : i32
    %119 = arith.muli %c2_i32, %c8_i32_31 : i32
    %120 = tpu.assume_multiple %119, 8 : i32
    %121 = arith.index_cast %120 : i32 to index
    %c0_32 = arith.constant 0 : index
    %122 = vector.load %arg1[%121, %c0_32] : memref<32x128xf32, #tpu.memory_space<vmem>>, vector<8x128xf32>
    %123 = arith.truncf %92 : vector<8x32xf32> to vector<8x32xbf16>
    %cst_33 = arith.constant dense<0.000000e+00> : vector<8x128xf32>
    %124 = tpu.matmul %123, %3, %cst_33 {dimension_numbers = #tpu.dot_dimension_numbers<[1], [0], [0], [1], [0, 0, 1, 1], [], []>} : vector<8x32xbf16>, vector<32x128xbf16>, vector<8x128xf32> -> vector<8x128xf32>
    %125 = arith.addf %122, %124 : vector<8x128xf32>
    %126 = vector.extract_strided_slice %125 {offsets = [0, 0], sizes = [8, 64], strides = [1, 1]} : vector<8x128xf32> to vector<8x64xf32>
    %127 = arith.negf %126 : vector<8x64xf32>
    %128 = math.exp %127 : vector<8x64xf32>
    %cst_34 = arith.constant 1.000000e+00 : f32
    %129 = vector.broadcast %cst_34 : f32 to vector<8x64xf32>
    %130 = arith.addf %129, %128 : vector<8x64xf32>
    %131 = arith.divf %129, %130 : vector<8x64xf32>
    %132 = vector.extract_strided_slice %131 {offsets = [0, 0], sizes = [8, 32], strides = [1, 1]} : vector<8x64xf32> to vector<8x32xf32>
    %133 = vector.extract_strided_slice %131 {offsets = [0, 32], sizes = [8, 32], strides = [1, 1]} : vector<8x64xf32> to vector<8x32xf32>
    %134 = vector.extract_strided_slice %125 {offsets = [0, 64], sizes = [8, 32], strides = [1, 1]} : vector<8x128xf32> to vector<8x32xf32>
    %135 = math.tanh %134 : vector<8x32xf32>
    %136 = vector.extract_strided_slice %125 {offsets = [0, 96], sizes = [8, 32], strides = [1, 1]} : vector<8x128xf32> to vector<8x32xf32>
    %137 = arith.negf %136 : vector<8x32xf32>
    %138 = math.exp %137 : vector<8x32xf32>
    %cst_35 = arith.constant 1.000000e+00 : f32
    %139 = vector.broadcast %cst_35 : f32 to vector<8x32xf32>
    %140 = arith.addf %139, %138 : vector<8x32xf32>
    %141 = arith.divf %139, %140 : vector<8x32xf32>
    %142 = arith.mulf %133, %90 : vector<8x32xf32>
    %143 = arith.mulf %132, %135 : vector<8x32xf32>
    %144 = arith.addf %142, %143 : vector<8x32xf32>
    %145 = math.tanh %144 : vector<8x32xf32>
    %146 = arith.mulf %141, %145 : vector<8x32xf32>
    %cst_36 = arith.constant 0.000000e+00 : f32
    %147 = vector.broadcast %cst_36 : f32 to vector<8x32xf32>
    %148 = arith.maximumf %146, %147 : vector<8x32xf32>
    %149 = tpu.concatenate %148, %116 in 1 : vector<8x32xf32>, vector<8x32xf32> -> vector<8x64xf32>
    %150 = arith.truncf %149 : vector<8x64xf32> to vector<8x64xbf16>
    %cst_37 = arith.constant dense<0.000000e+00> : vector<8x128xf32>
    %151 = tpu.matmul %150, %4, %cst_37 {dimension_numbers = #tpu.dot_dimension_numbers<[1], [0], [0], [1], [0, 0, 1, 1], [], []>} : vector<8x64xbf16>, vector<64x128xbf16>, vector<8x128xf32> -> vector<8x128xf32>
    %152 = arith.addf %151, %7 : vector<8x128xf32>
    %153 = vector.extract_strided_slice %152 {offsets = [0, 0], sizes = [8, 64], strides = [1, 1]} : vector<8x128xf32> to vector<8x64xf32>
    %154 = arith.negf %153 : vector<8x64xf32>
    %155 = math.exp %154 : vector<8x64xf32>
    %cst_38 = arith.constant 1.000000e+00 : f32
    %156 = vector.broadcast %cst_38 : f32 to vector<8x64xf32>
    %157 = arith.addf %156, %155 : vector<8x64xf32>
    %158 = arith.divf %156, %157 : vector<8x64xf32>
    %159 = vector.extract_strided_slice %158 {offsets = [0, 0], sizes = [8, 32], strides = [1, 1]} : vector<8x64xf32> to vector<8x32xf32>
    %160 = vector.extract_strided_slice %158 {offsets = [0, 32], sizes = [8, 32], strides = [1, 1]} : vector<8x64xf32> to vector<8x32xf32>
    %161 = vector.extract_strided_slice %152 {offsets = [0, 64], sizes = [8, 32], strides = [1, 1]} : vector<8x128xf32> to vector<8x32xf32>
    %162 = vector.extract_strided_slice %152 {offsets = [0, 96], sizes = [8, 32], strides = [1, 1]} : vector<8x128xf32> to vector<8x32xf32>
    %163 = arith.mulf %159, %162 : vector<8x32xf32>
    %164 = arith.addf %161, %163 : vector<8x32xf32>
    %165 = math.tanh %164 : vector<8x32xf32>
    %cst_39 = arith.constant 1.000000e+00 : f32
    %166 = vector.broadcast %cst_39 : f32 to vector<8x32xf32>
    %167 = arith.subf %166, %160 : vector<8x32xf32>
    %168 = arith.mulf %167, %165 : vector<8x32xf32>
    %169 = arith.mulf %160, %116 : vector<8x32xf32>
    %170 = arith.addf %168, %169 : vector<8x32xf32>
    %171 = arith.index_cast %120 : i32 to index
    %c0_40 = arith.constant 0 : index
    %172 = vector.load %arg7[%171, %c0_40] : memref<32x32xf32, #tpu.memory_space<vmem>>, vector<8x32xf32>
    tpu.vector_store %arg7[%171, %c0_40], %170 {strides = array<i32>} : memref<32x32xf32, #tpu.memory_space<vmem>>, vector<8x32xf32>,
    %c3_i32 = arith.constant 3 : i32
    %c8_i32_41 = arith.constant 8 : i32
    %173 = arith.muli %c3_i32, %c8_i32_41 : i32
    %174 = tpu.assume_multiple %173, 8 : i32
    %175 = arith.index_cast %174 : i32 to index
    %c0_42 = arith.constant 0 : index
    %176 = vector.load %arg1[%175, %c0_42] : memref<32x128xf32, #tpu.memory_space<vmem>>, vector<8x128xf32>
    %177 = arith.truncf %146 : vector<8x32xf32> to vector<8x32xbf16>
    %cst_43 = arith.constant dense<0.000000e+00> : vector<8x128xf32>
    %178 = tpu.matmul %177, %3, %cst_43 {dimension_numbers = #tpu.dot_dimension_numbers<[1], [0], [0], [1], [0, 0, 1, 1], [], []>} : vector<8x32xbf16>, vector<32x128xbf16>, vector<8x128xf32> -> vector<8x128xf32>
    %179 = arith.addf %176, %178 : vector<8x128xf32>
    %180 = vector.extract_strided_slice %179 {offsets = [0, 0], sizes = [8, 64], strides = [1, 1]} : vector<8x128xf32> to vector<8x64xf32>
    %181 = arith.negf %180 : vector<8x64xf32>
    %182 = math.exp %181 : vector<8x64xf32>
    %cst_44 = arith.constant 1.000000e+00 : f32
    %183 = vector.broadcast %cst_44 : f32 to vector<8x64xf32>
    %184 = arith.addf %183, %182 : vector<8x64xf32>
    %185 = arith.divf %183, %184 : vector<8x64xf32>
    %186 = vector.extract_strided_slice %185 {offsets = [0, 0], sizes = [8, 32], strides = [1, 1]} : vector<8x64xf32> to vector<8x32xf32>
    %187 = vector.extract_strided_slice %185 {offsets = [0, 32], sizes = [8, 32], strides = [1, 1]} : vector<8x64xf32> to vector<8x32xf32>
    %188 = vector.extract_strided_slice %179 {offsets = [0, 64], sizes = [8, 32], strides = [1, 1]} : vector<8x128xf32> to vector<8x32xf32>
    %189 = math.tanh %188 : vector<8x32xf32>
    %190 = vector.extract_strided_slice %179 {offsets = [0, 96], sizes = [8, 32], strides = [1, 1]} : vector<8x128xf32> to vector<8x32xf32>
    %191 = arith.negf %190 : vector<8x32xf32>
    %192 = math.exp %191 : vector<8x32xf32>
    %cst_45 = arith.constant 1.000000e+00 : f32
    %193 = vector.broadcast %cst_45 : f32 to vector<8x32xf32>
    %194 = arith.addf %193, %192 : vector<8x32xf32>
    %195 = arith.divf %193, %194 : vector<8x32xf32>
    %196 = arith.mulf %187, %144 : vector<8x32xf32>
    %197 = arith.mulf %186, %189 : vector<8x32xf32>
    %198 = arith.addf %196, %197 : vector<8x32xf32>
    %199 = math.tanh %198 : vector<8x32xf32>
    %200 = arith.mulf %195, %199 : vector<8x32xf32>
    %cst_46 = arith.constant 0.000000e+00 : f32
    %201 = vector.broadcast %cst_46 : f32 to vector<8x32xf32>
    %202 = arith.maximumf %200, %201 : vector<8x32xf32>
    %203 = tpu.concatenate %202, %170 in 1 : vector<8x32xf32>, vector<8x32xf32> -> vector<8x64xf32>
    %204 = arith.truncf %203 : vector<8x64xf32> to vector<8x64xbf16>
    %cst_47 = arith.constant dense<0.000000e+00> : vector<8x128xf32>
    %205 = tpu.matmul %204, %4, %cst_47 {dimension_numbers = #tpu.dot_dimension_numbers<[1], [0], [0], [1], [0, 0, 1, 1], [], []>} : vector<8x64xbf16>, vector<64x128xbf16>, vector<8x128xf32> -> vector<8x128xf32>
    %206 = arith.addf %205, %7 : vector<8x128xf32>
    %207 = vector.extract_strided_slice %206 {offsets = [0, 0], sizes = [8, 64], strides = [1, 1]} : vector<8x128xf32> to vector<8x64xf32>
    %208 = arith.negf %207 : vector<8x64xf32>
    %209 = math.exp %208 : vector<8x64xf32>
    %cst_48 = arith.constant 1.000000e+00 : f32
    %210 = vector.broadcast %cst_48 : f32 to vector<8x64xf32>
    %211 = arith.addf %210, %209 : vector<8x64xf32>
    %212 = arith.divf %210, %211 : vector<8x64xf32>
    %213 = vector.extract_strided_slice %212 {offsets = [0, 0], sizes = [8, 32], strides = [1, 1]} : vector<8x64xf32> to vector<8x32xf32>
    %214 = vector.extract_strided_slice %212 {offsets = [0, 32], sizes = [8, 32], strides = [1, 1]} : vector<8x64xf32> to vector<8x32xf32>
    %215 = vector.extract_strided_slice %206 {offsets = [0, 64], sizes = [8, 32], strides = [1, 1]} : vector<8x128xf32> to vector<8x32xf32>
    %216 = vector.extract_strided_slice %206 {offsets = [0, 96], sizes = [8, 32], strides = [1, 1]} : vector<8x128xf32> to vector<8x32xf32>
    %217 = arith.mulf %213, %216 : vector<8x32xf32>
    %218 = arith.addf %215, %217 : vector<8x32xf32>
    %219 = math.tanh %218 : vector<8x32xf32>
    %cst_49 = arith.constant 1.000000e+00 : f32
    %220 = vector.broadcast %cst_49 : f32 to vector<8x32xf32>
    %221 = arith.subf %220, %214 : vector<8x32xf32>
    %222 = arith.mulf %221, %219 : vector<8x32xf32>
    %223 = arith.mulf %214, %170 : vector<8x32xf32>
    %224 = arith.addf %222, %223 : vector<8x32xf32>
    %225 = arith.index_cast %174 : i32 to index
    %c0_50 = arith.constant 0 : index
    %226 = vector.load %arg7[%225, %c0_50] : memref<32x32xf32, #tpu.memory_space<vmem>>, vector<8x32xf32>
    tpu.vector_store %arg7[%225, %c0_50], %224 {strides = array<i32>} : memref<32x32xf32, #tpu.memory_space<vmem>>, vector<8x32xf32>,
    %c4_i32 = arith.constant 4 : i32
    %c0_51 = arith.constant 0 : index
    %c0_52 = arith.constant 0 : index
    %227 = vector.load %arg8[%c0_51, %c0_52] : memref<8x32xf32, #tpu.memory_space<vmem>>, vector<8x32xf32>
    tpu.vector_store %arg8[%c0_51, %c0_52], %200 {strides = array<i32>} : memref<8x32xf32, #tpu.memory_space<vmem>>, vector<8x32xf32>,
    %c0_53 = arith.constant 0 : index
    %c0_54 = arith.constant 0 : index
    %228 = vector.load %arg9[%c0_53, %c0_54] : memref<8x32xf32, #tpu.memory_space<vmem>>, vector<8x32xf32>
    tpu.vector_store %arg9[%c0_53, %c0_54], %198 {strides = array<i32>} : memref<8x32xf32, #tpu.memory_space<vmem>>, vector<8x32xf32>,
    %c0_55 = arith.constant 0 : index
    %c0_56 = arith.constant 0 : index
    %229 = vector.load %arg10[%c0_55, %c0_56] : memref<8x32xf32, #tpu.memory_space<vmem>>, vector<8x32xf32>
    tpu.vector_store %arg10[%c0_55, %c0_56], %224 {strides = array<i32>} : memref<8x32xf32, #tpu.memory_space<vmem>>, vector<8x32xf32>,
    %c0_57 = arith.constant 0 : index
    %c0_58 = arith.constant 0 : index
    %230 = vector.load %arg7[%c0_57, %c0_58] : memref<32x32xf32, #tpu.memory_space<vmem>>, vector<32x32xf32>
    %cst_59 = arith.constant 0.000000e+00 : f32
    %231 = vector.broadcast %cst_59 : f32 to vector<32x32xf32>
    %232 = arith.maximumf %230, %231 : vector<32x32xf32>
    %cst_60 = arith.constant dense<0.000000e+00> : vector<32xf32>
    %233 = vector.multi_reduction <add>, %232, %cst_60 [1] : vector<32x32xf32> to vector<32xf32>
    %234 = vector.shape_cast %233 : vector<32xf32> to vector<32x1xf32>
    %cst_61 = arith.constant 3.200000e+01 : f32
    %235 = vector.broadcast %cst_61 : f32 to vector<32x1xf32>
    %236 = arith.divf %234, %235 : vector<32x1xf32>
    %237 = vector.broadcast %236 : vector<32x1xf32> to vector<32x32xf32>
    %238 = arith.subf %232, %237 : vector<32x32xf32>
    %239 = arith.mulf %238, %238 : vector<32x32xf32>
    %cst_62 = arith.constant dense<0.000000e+00> : vector<32xf32>
    %240 = vector.multi_reduction <add>, %239, %cst_62 [1] : vector<32x32xf32> to vector<32xf32>
    %241 = vector.shape_cast %240 : vector<32xf32> to vector<32x1xf32>
    %cst_63 = arith.constant 3.200000e+01 : f32
    %242 = vector.broadcast %cst_63 : f32 to vector<32x1xf32>
    %243 = arith.divf %241, %242 : vector<32x1xf32>
    %cst_64 = arith.constant 9.99999974E-6 : f32
    %244 = vector.broadcast %cst_64 : f32 to vector<32x1xf32>
    %245 = arith.addf %243, %244 : vector<32x1xf32>
    %246 = math.rsqrt %245 : vector<32x1xf32>
    %247 = vector.broadcast %246 : vector<32x1xf32> to vector<32x32xf32>
    %248 = arith.mulf %238, %247 : vector<32x32xf32>
    %c0_65 = arith.constant 0 : index
    %c0_66 = arith.constant 0 : index
    %249 = vector.load %arg5[%c0_65, %c0_66] : memref<1x32xf32, #tpu.memory_space<vmem>>, vector<1x32xf32>
    %250 = vector.broadcast %249 : vector<1x32xf32> to vector<32x32xf32>
    %251 = arith.mulf %248, %250 : vector<32x32xf32>
    %c0_67 = arith.constant 0 : index
    %c0_68 = arith.constant 0 : index
    %252 = vector.load %arg6[%c0_67, %c0_68] : memref<1x32xf32, #tpu.memory_space<vmem>>, vector<1x32xf32>
    %253 = vector.broadcast %252 : vector<1x32xf32> to vector<32x32xf32>
    %254 = arith.addf %251, %253 : vector<32x32xf32>
    %c0_69 = arith.constant 0 : index
    %c0_70 = arith.constant 0 : index
    %255 = vector.load %arg7[%c0_69, %c0_70] : memref<32x32xf32, #tpu.memory_space<vmem>>, vector<32x32xf32>
    tpu.vector_store %arg7[%c0_69, %c0_70], %254 {strides = array<i32>} : memref<32x32xf32, #tpu.memory_space<vmem>>, vector<32x32xf32>,
    return
  }
  func.func @transform_0(%arg0: i32) -> (i32, i32) {
    %c0_i32 = arith.constant 0 : i32
    %c0_i32_0 = arith.constant 0 : i32
    return %arg0, %c0_i32 : i32, i32
  }
  func.func @transform_1(%arg0: i32) -> (i32, i32) {
    %c0_i32 = arith.constant 0 : i32
    %c0_i32_0 = arith.constant 0 : i32
    %c0_i32_1 = arith.constant 0 : i32
    return %c0_i32, %c0_i32_0 : i32, i32
  }
  func.func @transform_2(%arg0: i32) -> (i32, i32) {
    %c0_i32 = arith.constant 0 : i32
    %c0_i32_0 = arith.constant 0 : i32
    %c0_i32_1 = arith.constant 0 : i32
    return %c0_i32, %c0_i32_0 : i32, i32
  }
  func.func @transform_3(%arg0: i32) -> (i32, i32) {
    %c0_i32 = arith.constant 0 : i32
    %c0_i32_0 = arith.constant 0 : i32
    %c0_i32_1 = arith.constant 0 : i32
    return %c0_i32, %c0_i32_0 : i32, i32
  }
  func.func @transform_4(%arg0: i32) -> (i32, i32) {
    %c0_i32 = arith.constant 0 : i32
    %c0_i32_0 = arith.constant 0 : i32
    %c0_i32_1 = arith.constant 0 : i32
    return %c0_i32, %c0_i32_0 : i32, i32
  }
  func.func @transform_5(%arg0: i32) -> (i32, i32) {
    %c0_i32 = arith.constant 0 : i32
    %c0_i32_0 = arith.constant 0 : i32
    %c0_i32_1 = arith.constant 0 : i32
    return %c0_i32, %c0_i32_0 : i32, i32
  }
  func.func @transform_6(%arg0: i32) -> (i32, i32) {
    %c0_i32 = arith.constant 0 : i32
    %c0_i32_0 = arith.constant 0 : i32
    return %arg0, %c0_i32 : i32, i32
  }
}

</mosaic_0001>

<llo_original>
// kernel: tpu_custom_call.1
$region0: #{tpu_custom_call.1}
  #allocation0 [shape = 'u32[]', space=smem, size = 0x4, offset = 0x4, fixed_abs, tag = 'smem constant byte address 0x4 - core index']
  #allocation1 [shape = 'u32[72,128]{1,0:T(1,128)}', space=vmem, size = 0x9000, scoped, tag = 'internal scratch']
  #allocation2 [shape = 'f32[8,32]{1,0:T(8,128)}', space=vmem, size = 0x1000, scoped, tag = 'scratch operand']
  #allocation3 [shape = 'f32[8,32]{1,0:T(8,128)}', space=vmem, size = 0x1000, scoped, tag = 'scratch operand']
  #allocation4 [shape = 'f32[8,32]{1,0:T(8,128)}', space=vmem, size = 0x1000, scoped, tag = 'scratch operand']
  %s0 = inlined_call_operand.hbm [shape: f32[64,128], index: 0, kind: input, shape index: {}]
  %s1 = inlined_call_operand.hbm [shape: bf16[32,128], index: 1, kind: input, shape index: {}]
  %s2 = inlined_call_operand.hbm [shape: bf16[64,128], index: 2, kind: input, shape index: {}]
  %s3 = inlined_call_operand.vmem [shape: f32[1,128], index: 3, kind: input, shape index: {}]
  %s4 = inlined_call_operand.vmem [shape: f32[1,32], index: 4, kind: input, shape index: {}]
  %s5 = inlined_call_operand.vmem [shape: f32[1,32], index: 5, kind: input, shape index: {}]
  %s6 = inlined_call_operand.vmem [shape: f32[64,32], index: 6, kind: output, shape index: {}]
  %s7 = sld [smem:[#allocation0]]
  $region73: #{tpu_custom_call.1} parent=0
    _
  %s9 = ssub.s32 1, %s7
  %s10 = scalar_select 0, %s9, %s7
  $region1: #{tpu_custom_call.1} parent=0
    #allocation5 [shape = 'u8[32768]{0}', space=vmem, size = 0x8000, scoped, tag = 'input window, operand 0']
    #allocation6 [shape = 's32[2]{0}', space=sflag, size = 0x8, scoped, tag = 'scoped memory for tpu_custom_call.1']
    #allocation7 [shape = 'u8[8192]{0}', space=vmem, size = 0x2000, scoped, tag = 'input window, operand 1, single buffered']
    #allocation8 [shape = 's32[1]{0}', space=sflag, size = 0x4, scoped, tag = 'scoped memory for tpu_custom_call.1']
    #allocation9 [shape = 'u8[16384]{0}', space=vmem, size = 0x4000, scoped, tag = 'input window, operand 2, single buffered']
    %11 = vsyncpa [#allocation6], 0
    %s12 = scalar_lea.sflag [#allocation6], 1
    %13 = vsyncpa %s12, 0
    %14 = vsyncpa [#allocation8], 0
    loop: start=0, step=1, limit=4
    $region2: #{tpu_custom_call.1} parent=1 // loop_pre_header
      _
    $region3: #{tpu_custom_call.1} parent=1 // loop_header
      %s16 = sphi 0, %s20
      %p17 = scmp.ge.s32.totalorder %s16, 4
      %s26 = sphi 0, %s28
      %s29 = sphi 0, %s26
      %s30 = sphi 0, %s29
      %s46 = sphi 0, %s30
      %s50 = sphi 0, %s50
      %s52 = sphi 0, %s50
      %s53 = sphi 0, %s52
      %s67 = sphi 0, %s53
      %s71 = sphi 0, %s71
      %s73 = sphi 0, %s71
      %s74 = sphi 0, %s73
      %s88 = sphi 0, %s74
      %s92 = sphi 0, %s92
      %s94 = sphi 0, %s92
      %s95 = sphi 0, %s94
      %s109 = sphi 0, %s95
      %s113 = sphi 0, %s113
      %s115 = sphi 0, %s113
      %s116 = sphi 0, %s115
      %s130 = sphi 0, %s116
      %s134 = sphi 0, %s134
      %s136 = sphi 0, %s134
      %s137 = sphi 0, %s136
      %s151 = sphi 0, %s137
      %s157 = sphi 0, %s159
      %s160 = sphi 0, %s157
      %s161 = sphi 0, %s160
      %s177 = sphi 0, %s161
    $region4: #{tpu_custom_call.1} parent=1 // loop_header_branch
      %19 = sbr.rel (%p17) target = $region8
    $region5: #{tpu_custom_call.1} parent=1 // loop_body
      %s21 = ssub.s32 %s16, 1
      %s22 = ssub.s32 %s16, 2
      %s23 = sadd.s32 %s16, 1
      %s24 = ssub.s32 %s16, %s23
      %p25 = scmp.eq.s32.totalorder %s24, 0
      %s27 = sadd.s32 %s26, 1
      %s28 = scalar_select %p25, %s26, %s27
      %p31 = pneg %p25
      %p32 = scmp.eq.s32.totalorder %s16, 1
      %p33 = por %p31, %p32
      %p34 = scmp.ne.s32.totalorder %s26, %s29
      %p35 = scmp.eq.s32.totalorder %s16, 0
      %p36 = por %p34, %p35
      %p37 = scmp.ne.s32.totalorder %s26, %s29
      %p38 = scmp.eq.s32.totalorder %s21, 1
      %p39 = por %p37, %p38
      %p40 = scmp.ne.s32.totalorder %s29, %s30
      %p41 = scmp.eq.s32.totalorder %s21, 0
      %p42 = por %p40, %p41
      %p43 = scmp.ne.s32.totalorder %s29, %s30
      %p44 = scmp.eq.s32.totalorder %s22, 1
      %p45 = por %p43, %p44
      %p47 = scmp.ne.s32.totalorder %s30, %s46
      %p48 = scmp.eq.s32.totalorder %s22, 0
      %p49 = por %p47, %p48
      %s51 = sadd.s32 %s50, 1
      %p54 = scmp.eq.s32.totalorder %s16, 1
      %p55 = scmp.ne.s32.totalorder %s50, %s52
      %p56 = scmp.eq.s32.totalorder %s16, 0
      %p57 = por %p55, %p56
      %p58 = scmp.ne.s32.totalorder %s50, %s52
      %p59 = scmp.eq.s32.totalorder %s21, 1
      %p60 = por %p58, %p59
      %p61 = scmp.ne.s32.totalorder %s52, %s53
      %p62 = scmp.eq.s32.totalorder %s21, 0
      %p63 = por %p61, %p62
      %p64 = scmp.ne.s32.totalorder %s52, %s53
      %p65 = scmp.eq.s32.totalorder %s22, 1
      %p66 = por %p64, %p65
      %p68 = scmp.ne.s32.totalorder %s53, %s67
      %p69 = scmp.eq.s32.totalorder %s22, 0
      %p70 = por %p68, %p69
      %s72 = sadd.s32 %s71, 1
      %p75 = scmp.eq.s32.totalorder %s16, 1
      %p76 = scmp.ne.s32.totalorder %s71, %s73
      %p77 = scmp.eq.s32.totalorder %s16, 0
      %p78 = por %p76, %p77
      %p79 = scmp.ne.s32.totalorder %s71, %s73
      %p80 = scmp.eq.s32.totalorder %s21, 1
      %p81 = por %p79, %p80
      %p82 = scmp.ne.s32.totalorder %s73, %s74
      %p83 = scmp.eq.s32.totalorder %s21, 0
      %p84 = por %p82, %p83
      %p85 = scmp.ne.s32.totalorder %s73, %s74
      %p86 = scmp.eq.s32.totalorder %s22, 1
      %p87 = por %p85, %p86
      %p89 = scmp.ne.s32.totalorder %s74, %s88
      %p90 = scmp.eq.s32.totalorder %s22, 0
      %p91 = por %p89, %p90
      %s93 = sadd.s32 %s92, 1
      %p96 = scmp.eq.s32.totalorder %s16, 1
      %p97 = scmp.ne.s32.totalorder %s92, %s94
      %p98 = scmp.eq.s32.totalorder %s16, 0
      %p99 = por %p97, %p98
      %p100 = scmp.ne.s32.totalorder %s92, %s94
      %p101 = scmp.eq.s32.totalorder %s21, 1
      %p102 = por %p100, %p101
      %p103 = scmp.ne.s32.totalorder %s94, %s95
      %p104 = scmp.eq.s32.totalorder %s21, 0
      %p105 = por %p103, %p104
      %p106 = scmp.ne.s32.totalorder %s94, %s95
      %p107 = scmp.eq.s32.totalorder %s22, 1
      %p108 = por %p106, %p107
      %p110 = scmp.ne.s32.totalorder %s95, %s109
      %p111 = scmp.eq.s32.totalorder %s22, 0
      %p112 = por %p110, %p111
      %s114 = sadd.s32 %s113, 1
      %p117 = scmp.eq.s32.totalorder %s16, 1
      %p118 = scmp.ne.s32.totalorder %s113, %s115
      %p119 = scmp.eq.s32.totalorder %s16, 0
      %p120 = por %p118, %p119
      %p121 = scmp.ne.s32.totalorder %s113, %s115
      %p122 = scmp.eq.s32.totalorder %s21, 1
      %p123 = por %p121, %p122
      %p124 = scmp.ne.s32.totalorder %s115, %s116
      %p125 = scmp.eq.s32.totalorder %s21, 0
      %p126 = por %p124, %p125
      %p127 = scmp.ne.s32.totalorder %s115, %s116
      %p128 = scmp.eq.s32.totalorder %s22, 1
      %p129 = por %p127, %p128
      %p131 = scmp.ne.s32.totalorder %s116, %s130
      %p132 = scmp.eq.s32.totalorder %s22, 0
      %p133 = por %p131, %p132
      %s135 = sadd.s32 %s134, 1
      %p138 = scmp.eq.s32.totalorder %s16, 1
      %p139 = scmp.ne.s32.totalorder %s134, %s136
      %p140 = scmp.eq.s32.totalorder %s16, 0
      %p141 = por %p139, %p140
      %p142 = scmp.ne.s32.totalorder %s134, %s136
      %p143 = scmp.eq.s32.totalorder %s21, 1
      %p144 = por %p142, %p143
      %p145 = scmp.ne.s32.totalorder %s136, %s137
      %p146 = scmp.eq.s32.totalorder %s21, 0
      %p147 = por %p145, %p146
      %p148 = scmp.ne.s32.totalorder %s136, %s137
      %p149 = scmp.eq.s32.totalorder %s22, 1
      %p150 = por %p148, %p149
      %p152 = scmp.ne.s32.totalorder %s137, %s151
      %p153 = scmp.eq.s32.totalorder %s22, 0
      %p154 = por %p152, %p153
      %s155 = ssub.s32 %s16, %s23
      %p156 = scmp.eq.s32.totalorder %s155, 0
      %s158 = sadd.s32 %s157, 1
      %s159 = scalar_select %p156, %s157, %s158
      %p162 = pneg %p156
      %p163 = scmp.eq.s32.totalorder %s16, 1
      %p164 = por %p162, %p163
      %p165 = scmp.ne.s32.totalorder %s157, %s160
      %p166 = scmp.eq.s32.totalorder %s16, 0
      %p167 = por %p165, %p166
      %p168 = scmp.ne.s32.totalorder %s157, %s160
      %p169 = scmp.eq.s32.totalorder %s21, 1
      %p170 = por %p168, %p169
      %p171 = scmp.ne.s32.totalorder %s160, %s161
      %p172 = scmp.eq.s32.totalorder %s21, 0
      %p173 = por %p171, %p172
      %p174 = scmp.ne.s32.totalorder %s160, %s161
      %p175 = scmp.eq.s32.totalorder %s22, 1
      %p176 = por %p174, %p175
      %p178 = scmp.ne.s32.totalorder %s161, %s177
      %p179 = scmp.eq.s32.totalorder %s22, 0
      %p180 = por %p178, %p179
      %p181 = scmp.le.s32.totalorder 1, %s16
      %p182 = scmp.lt.s32.totalorder %s16, 3
      %p183 = pnand %p181, %p182
      %p184 = pneg %p183
      // Predicated region
      $region9: #{tpu_custom_call.1} parent=5 // pred_check
        _
      $region10: #{tpu_custom_call.1} parent=5 // pred_check_branch
        %186 = sbr.rel (%p183) target = $region12
      $region11: #{tpu_custom_call.1} parent=5 // pred_region
        %s187 = ssub.s32 %s16, 1
        // Predicated region
        $region13: #{tpu_custom_call.1} parent=11 // pred_check
          %p188 = pneg %p63
        $region14: #{tpu_custom_call.1} parent=11 // pred_check_branch
          %190 = sbr.rel (%p188) target = $region16
        $region15: #{tpu_custom_call.1} parent=11 // pred_region
          %192 = vsyncadd [#allocation8], 0
          %s193 = sshll.u32 %s1, 4
          %s194 = int_to_ptr.hbm [resolvable:$true] %s193
          %s195 = sshll.u32 [#allocation7], 4
          %s196 = int_to_ptr.vmem [resolvable:$true] %s195
          %201 = dma.hbm_to_vmem [thread:$0]  %s194, 256, %s196, [#allocation8], 64, 64, 4
        $region16: #{tpu_custom_call.1} parent=11 // pred_fallthru
          _
        // Predicated region
        $region17: #{tpu_custom_call.1} parent=11 // pred_check
          %p202 = pneg %p84
        $region18: #{tpu_custom_call.1} parent=11 // pred_check_branch
          %204 = sbr.rel (%p202) target = $region20
        $region19: #{tpu_custom_call.1} parent=11 // pred_region
          %206 = vsyncadd [#allocation8], 0
          %s207 = sshll.u32 %s2, 4
          %s208 = int_to_ptr.hbm [resolvable:$true] %s207
          %s209 = sshll.u32 [#allocation9], 4
          %s210 = int_to_ptr.vmem [resolvable:$true] %s209
          %215 = dma.hbm_to_vmem [thread:$0]  %s208, 512, %s210, [#allocation8], 64, 64, 4
        $region20: #{tpu_custom_call.1} parent=11 // pred_fallthru
          _
        // Predicated region
        $region21: #{tpu_custom_call.1} parent=11 // pred_check
          %p216 = pneg %p105
        $region22: #{tpu_custom_call.1} parent=11 // pred_check_branch
          %218 = sbr.rel (%p216) target = $region24
        $region23: #{tpu_custom_call.1} parent=11 // pred_region
          _
        $region24: #{tpu_custom_call.1} parent=11 // pred_fallthru
          _
        // Predicated region
        $region25: #{tpu_custom_call.1} parent=11 // pred_check
          %p219 = pneg %p126
        $region26: #{tpu_custom_call.1} parent=11 // pred_check_branch
          %221 = sbr.rel (%p219) target = $region28
        $region27: #{tpu_custom_call.1} parent=11 // pred_region
          _
        $region28: #{tpu_custom_call.1} parent=11 // pred_fallthru
          _
        // Predicated region
        $region29: #{tpu_custom_call.1} parent=11 // pred_check
          %p222 = pneg %p147
        $region30: #{tpu_custom_call.1} parent=11 // pred_check_branch
          %224 = sbr.rel (%p222) target = $region32
        $region31: #{tpu_custom_call.1} parent=11 // pred_region
          _
        $region32: #{tpu_custom_call.1} parent=11 // pred_fallthru
          _
      $region12: #{tpu_custom_call.1} parent=5 // pred_fallthru
        _
      %p225 = scmp.lt.s32.totalorder %s16, 2
      // Predicated region
      $region33: #{tpu_custom_call.1} parent=5 // pred_check
        %p226 = pneg %p225
      $region34: #{tpu_custom_call.1} parent=5 // pred_check_branch
        %228 = sbr.rel (%p226) target = $region36
      $region35: #{tpu_custom_call.1} parent=5 // pred_region
        // Predicated region
        $region37: #{tpu_custom_call.1} parent=35 // pred_check
          %p229 = pneg %p36
        $region38: #{tpu_custom_call.1} parent=35 // pred_check_branch
          %231 = sbr.rel (%p229) target = $region40
        $region39: #{tpu_custom_call.1} parent=35 // pred_region
          %s232 = sand.u32 %s26, 1
          %s233 = scalar_lea.sflag [#allocation6], %s232
          %s234 = sand.u32 %s26, 1
          %s235 = smul.addr %s234, 32
          %s236 = scalar_lea.vmem [#allocation5], %s235
          %s237 = smul.u32 4, %s16
          %239 = vsyncadd %s233, 0
          %s240 = smul.addr %s237, 8
          %s241 = scalar_lea.hbm %s0, %s240
          %s242 = sshll.u32 %s241, 4
          %s243 = int_to_ptr.hbm [resolvable:$true] %s242
          %s244 = sshll.u32 %s236, 4
          %s245 = int_to_ptr.vmem [resolvable:$true] %s244
          %250 = dma.hbm_to_vmem [thread:$0]  %s243, 512, %s245, %s233, 128, 128, 8
        $region40: #{tpu_custom_call.1} parent=35 // pred_fallthru
          _
      $region36: #{tpu_custom_call.1} parent=5 // pred_fallthru
        _
      %p251 = scmp.le.s32.totalorder 1, %s16
      %p252 = scmp.lt.s32.totalorder %s16, 3
      %p253 = pnand %p251, %p252
      %p254 = pneg %p253
      // Predicated region
      $region41: #{tpu_custom_call.1} parent=5 // pred_check
        _
      $region42: #{tpu_custom_call.1} parent=5 // pred_check_branch
        %256 = sbr.rel (%p253) target = $region44
      $region43: #{tpu_custom_call.1} parent=5 // pred_region
        %s257 = ssub.s32 %s16, 1
        %s258 = sand.u32 %s29, 1
        %s259 = scalar_lea.sflag [#allocation6], %s258
        %s260 = sand.u32 %s29, 1
        %s261 = smul.addr %s260, 32
        %s262 = scalar_lea.vmem [#allocation5], %s261
        // Predicated region
        $region45: #{tpu_custom_call.1} parent=43 // pred_check
          %p263 = pneg %p42
        $region46: #{tpu_custom_call.1} parent=43 // pred_check_branch
          %265 = sbr.rel (%p263) target = $region48
        $region47: #{tpu_custom_call.1} parent=43 // pred_region
          %267 = dma.done %s259, 512
        $region48: #{tpu_custom_call.1} parent=43 // pred_fallthru
          _
        // Predicated region
        $region49: #{tpu_custom_call.1} parent=43 // pred_check
          %p268 = pneg %p63
        $region50: #{tpu_custom_call.1} parent=43 // pred_check_branch
          %270 = sbr.rel (%p268) target = $region52
        $region51: #{tpu_custom_call.1} parent=43 // pred_region
          %272 = dma.done [#allocation8], 256
        $region52: #{tpu_custom_call.1} parent=43 // pred_fallthru
          _
        // Predicated region
        $region53: #{tpu_custom_call.1} parent=43 // pred_check
          %p273 = pneg %p84
        $region54: #{tpu_custom_call.1} parent=43 // pred_check_branch
          %275 = sbr.rel (%p273) target = $region56
        $region55: #{tpu_custom_call.1} parent=43 // pred_region
          %277 = dma.done [#allocation8], 512
        $region56: #{tpu_custom_call.1} parent=43 // pred_fallthru
          _
        %s278 = sand.u32 %s29, 1
        %s279 = scalar_lea.sflag [#allocation6], %s278
        %s280 = sand.u32 %s29, 1
        %s281 = smul.addr %s280, 32
        %s282 = scalar_lea.vmem [#allocation5], %s281
        %p283 = pneg %p42
        %p284 = pneg %p39
        %p285 = pneg %p63
        %p286 = pneg %p60
        %p287 = pneg %p84
        %p288 = pneg %p81
        %p289 = pneg %p105
        %p290 = pneg %p102
        %p291 = pneg %p126
        %p292 = pneg %p123
        %p293 = pneg %p147
        %p294 = pneg %p144
        %p295 = pneg %p173
        %p296 = pneg %p170
        %s297 = smul.u32 4, %s21
        %p298 = scmp.lt.s32.totalorder %s297, 7
        %s299 = scalar_select %p298, %s297, 7
        %s300 = smul.addr %s299, 8
        %s301 = scalar_lea.vmem %s6, %s300
        %s302 = smul.u32 4, %s21
        %s303 = smul.u32 4, %s21
        %p304 = scmp.lt.s32.totalorder %s303, 7
        %s305 = scalar_select %p304, %s303, 7
        %s306 = smul.addr %s305, 8
        %s307 = scalar_lea.vmem %s6, %s306
        %s308 = smul.u32 4, %s21
        %p310 = scmp.eq.s32.totalorder %s21, 0
        // Predicated region
        $region57: #{tpu_custom_call.1} parent=43 // pred_check
          %p311 = pneg %p310
        $region58: #{tpu_custom_call.1} parent=43 // pred_check_branch
          %313 = sbr.rel (%p311) target = $region60
        $region59: #{tpu_custom_call.1} parent=43 // pred_region
          %vm314 = vcmask 261120
          %315 = vst.msk [vmem:[#allocation2] sm:$0xff] %vm314, 0.0
          %316 = vst.msk [vmem:[#allocation3] sm:$0xff] %vm314, 0.0
          %317 = vst.msk [vmem:[#allocation4] sm:$0xff] %vm314, 0.0
        $region60: #{tpu_custom_call.1} parent=43 // pred_fallthru
          _
        %v318 = vld [vmem:[#allocation7] sm:$0xf]
        %v319 = vld [vmem:[#allocation7 + $0x4] sm:$0xf]
        %v320 = vld [vmem:[#allocation7 + $0x8] sm:$0xf]
        %v321 = vld [vmem:[#allocation7 + $0xc] sm:$0xf]
        %v322 = vld [vmem:[#allocation9] sm:$0xf]
        %v323 = vld [vmem:[#allocation9 + $0x4] sm:$0xf]
        %v324 = vld [vmem:[#allocation9 + $0x8] sm:$0xf]
        %v325 = vld [vmem:[#allocation9 + $0xc] sm:$0xf]
        %v326 = vld [vmem:[#allocation9 + $0x10] sm:$0xf]
        %v327 = vld [vmem:[#allocation9 + $0x14] sm:$0xf]
        %v328 = vld [vmem:[#allocation9 + $0x18] sm:$0xf]
        %v329 = vld [vmem:[#allocation9 + $0x1c] sm:$0xf]
        %v330 = vld [vmem:[%s3] sm:$0x1]
        %v332 = vperm.slane %v330, 0
        %v334 = vld [vmem:[#allocation2] sm:$0xff]
        %v335 = vld [vmem:[#allocation3] sm:$0xff]
        %v336 = vld [vmem:[#allocation4] sm:$0xff]
        %v337 = vld [vmem:[%s262] sm:$0xff]
        %v338 = vpack.c.bf16 %v334, %v334
        %v343 = vunpack.c.l.b16 %v318
        %v344 = vunpack.c.l.b16 %v319
        %v345 = vunpack.c.l.b16 %v320
        %v346 = vunpack.c.l.b16 %v321
        %v347 = vpack.c.b16 %v344, %v343
        %v348 = vpack.c.b16 %v346, %v345
        %vm351 = vcmask 261120
        %v353 = vsel %vm351, %v338, 0
        %355 = vmatpush.bf16.msra.mxu0 0
        %356 = vmatpush.bf16.msra.mxu0 0
        %357 = vmatpush.bf16.msra.mxu0 0
        %358 = vmatpush.bf16.msra.mxu0 0
        %359 = vmatpush.bf16.msra.mxu0 0
        %360 = vmatpush.bf16.msra.mxu0 0
        %361 = vmatpush.bf16.msra.mxu0 %v348
        %362 = vmatpush.bf16.msra.mxu0 %v347
        %363 = vmatmul.bf16.gmra.mxu0 %v353
        %v364 = vpop.f32.mrf.mxu0
        %v365 = vadd.f32 0.0, %v364
        %v366 = vpop.f32.mrf.mxu0
        %367 = vdwg.mxu0
        %v368 = vadd.f32 %v337, %v365
        %v369 = vxor.u32 %v368, 2147483648
        %v370 = vmul.f32 %v369, 1.442695
        %v371 = vpow.pop %v370
        %v372 = vadd.f32 %v371, 1.0
        %v373 = vrcp.pop %v372
        %v374 = vmul.f32 %v372, %v373
        %v375 = vsub.f32 1.0, %v374
        %v376 = vmul.f32 %v373, %v375
        %v377 = vadd.f32 %v373, %v376
        %vm378 = vweird.f32 %v372
        %vm379 = vweird.f32 %v373
        %vm380 = vmor %vm378, %vm379
        %v381 = vsel %vm380, %v373, %v377
        %v382 = vand.u32 2147483647, %v372
        %vm383 = vcmp.eq.f32.partialorder %v382, 8.507059e+37
        %v384 = vand.u32 %v372, 2147483648
        %v385 = vor.u32 1.1754944e-38, %v384
        %v386 = vsel %vm383, %v385, %v381
        %v387 = vmul.f32 1.0, %v386
        %v388 = vtanh.pop %v368
        %390 = vrot.lane.b32.xlu0 %v335, 32
        %v391 = vpop.permute.xlu0 %390
        %v393 = vmul.f32 %v387, %v391
        %395 = vrot.lane.b32.xlu0 %v388, 64
        %v396 = vpop.permute.xlu0 %395
        %v398 = vmul.f32 %v387, %v396
        %400 = vrot.lane.b32.xlu0 %v398, 32
        %v401 = vpop.permute.xlu0 %400
        %v403 = vadd.f32 %v393, %v401
        %v404 = vtanh.pop %v403
        %406 = vrot.lane.b32.xlu0 %v404, 64
        %v407 = vpop.permute.xlu0 %406
        %v409 = vmul.f32 %v387, %v407
        %v410 = vmax.f32 %v409, 0.0
        %412 = vrot.lane.b32.xlu0 %v410, 32
        %v413 = vpop.permute.xlu0 %412
        %416 = vrot.lane.b32.xlu0 %v336, 32
        %v417 = vpop.permute.xlu0 %416
        %v419 = vsel %vm351, %v413, %v417
        %v420 = vpack.c.bf16 %v419, %v419
        %v429 = vunpack.c.l.b16 %v322
        %v430 = vunpack.c.l.b16 %v323
        %v431 = vunpack.c.l.b16 %v324
        %v432 = vunpack.c.l.b16 %v325
        %v433 = vunpack.c.l.b16 %v326
        %v434 = vunpack.c.l.b16 %v327
        %v435 = vunpack.c.l.b16 %v328
        %v436 = vunpack.c.l.b16 %v329
        %v437 = vpack.c.b16 %v430, %v429
        %v438 = vpack.c.b16 %v432, %v431
        %v439 = vpack.c.b16 %v434, %v433
        %v440 = vpack.c.b16 %v436, %v435
        %vm445 = vcmask 523264
        %v447 = vsel %vm445, %v420, 0
        %449 = vmatpush.bf16.msra.mxu0 0
        %450 = vmatpush.bf16.msra.mxu0 0
        %451 = vmatpush.bf16.msra.mxu0 0
        %452 = vmatpush.bf16.msra.mxu0 0
        %453 = vmatpush.bf16.msra.mxu0 %v440
        %454 = vmatpush.bf16.msra.mxu0 %v439
        %455 = vmatpush.bf16.msra.mxu0 %v438
        %456 = vmatpush.bf16.msra.mxu0 %v437
        %457 = vmatmul.bf16.gmra.mxu0 %v447
        %v458 = vpop.f32.mrf.mxu0
        %v459 = vadd.f32 %v332, %v458
        %v460 = vpop.f32.mrf.mxu0
        %461 = vdwg.mxu0
        %v462 = vxor.u32 %v459, 2147483648
        %v463 = vmul.f32 %v462, 1.442695
        %v464 = vpow.pop %v463
        %v465 = vadd.f32 %v464, 1.0
        %v466 = vrcp.pop %v465
        %v467 = vmul.f32 %v465, %v466
        %v468 = vsub.f32 1.0, %v467
        %v469 = vmul.f32 %v466, %v468
        %v470 = vadd.f32 %v466, %v469
        %vm471 = vweird.f32 %v465
        %vm472 = vweird.f32 %v466
        %vm473 = vmor %vm471, %vm472
        %v474 = vsel %vm473, %v466, %v470
        %v475 = vand.u32 2147483647, %v465
        %vm476 = vcmp.eq.f32.partialorder %v475, 8.507059e+37
        %v477 = vand.u32 %v465, 2147483648
        %v478 = vor.u32 1.1754944e-38, %v477
        %v479 = vsel %vm476, %v478, %v474
        %v480 = vmul.f32 1.0, %v479
        %482 = vrot.lane.b32.xlu0 %v459, 32
        %v483 = vpop.permute.xlu0 %482
        %v485 = vmul.f32 %v480, %v483
        %487 = vrot.lane.b32.xlu0 %v485, 64
        %v488 = vpop.permute.xlu0 %487
        %v490 = vadd.f32 %v459, %v488
        %v491 = vtanh.pop %v490
        %v492 = vsub.f32 1.0, %v480
        %494 = vrot.lane.b32.xlu0 %v491, 96
        %v495 = vpop.permute.xlu0 %494
        %v497 = vmul.f32 %v492, %v495
        %v498 = vmul.f32 %v480, %v417
        %v499 = vadd.f32 %v497, %v498
        %501 = vrot.lane.b32.xlu0 %v499, 96
        %v502 = vpop.permute.xlu0 %501
        %504 = vst.msk [vmem:[%s307] sm:$0xff] %vm351, %v502
        %s505 = scalar_lea.vmem %s262, 8 [#allocation5]
        %v506 = vld [vmem:[%s505] sm:$0xff]
        %v507 = vpack.c.bf16 %v409, %v409
        %509 = vrot.lane.b32.xlu0 %v507, 32
        %v510 = vpop.permute.xlu0 %509
        %v512 = vsel %vm351, %v510, 0
        %514 = vmatpush.bf16.msra.mxu0 0
        %515 = vmatpush.bf16.msra.mxu0 0
        %516 = vmatpush.bf16.msra.mxu0 0
        %517 = vmatpush.bf16.msra.mxu0 0
        %518 = vmatpush.bf16.msra.mxu0 0
        %519 = vmatpush.bf16.msra.mxu0 0
        %520 = vmatpush.bf16.msra.mxu0 %v348
        %521 = vmatpush.bf16.msra.mxu0 %v347
        %522 = vmatmul.bf16.gmra.mxu0 %v512
        %v523 = vpop.f32.mrf.mxu0
        %v524 = vadd.f32 0.0, %v523
        %v525 = vpop.f32.mrf.mxu0
        %526 = vdwg.mxu0
        %v527 = vadd.f32 %v506, %v524
        %v528 = vxor.u32 %v527, 2147483648
        %v529 = vmul.f32 %v528, 1.442695
        %v530 = vpow.pop %v529
        %v531 = vadd.f32 %v530, 1.0
        %v532 = vrcp.pop %v531
        %v533 = vmul.f32 %v531, %v532
        %v534 = vsub.f32 1.0, %v533
        %v535 = vmul.f32 %v532, %v534
        %v536 = vadd.f32 %v532, %v535
        %vm537 = vweird.f32 %v531
        %vm538 = vweird.f32 %v532
        %vm539 = vmor %vm537, %vm538
        %v540 = vsel %vm539, %v532, %v536
        %v541 = vand.u32 2147483647, %v531
        %vm542 = vcmp.eq.f32.partialorder %v541, 8.507059e+37
        %v543 = vand.u32 %v531, 2147483648
        %v544 = vor.u32 1.1754944e-38, %v543
        %v545 = vsel %vm542, %v544, %v540
        %v546 = vmul.f32 1.0, %v545
        %v547 = vtanh.pop %v527
        %v548 = vmul.f32 %v546, %v403
        %550 = vrot.lane.b32.xlu0 %v547, 64
        %v551 = vpop.permute.xlu0 %550
        %v553 = vmul.f32 %v546, %v551
        %555 = vrot.lane.b32.xlu0 %v553, 32
        %v556 = vpop.permute.xlu0 %555
        %v558 = vadd.f32 %v548, %v556
        %v559 = vtanh.pop %v558
        %561 = vrot.lane.b32.xlu0 %v559, 64
        %v562 = vpop.permute.xlu0 %561
        %v564 = vmul.f32 %v546, %v562
        %v565 = vmax.f32 %v564, 0.0
        %567 = vrot.lane.b32.xlu0 %v565, 32
        %v568 = vpop.permute.xlu0 %567
        %v570 = vsel %vm351, %v568, %v499
        %v571 = vpack.c.bf16 %v570, %v570
        %v573 = vsel %vm445, %v571, 0
        %575 = vmatpush.bf16.msra.mxu0 0
        %576 = vmatpush.bf16.msra.mxu0 0
        %577 = vmatpush.bf16.msra.mxu0 0
        %578 = vmatpush.bf16.msra.mxu0 0
        %579 = vmatpush.bf16.msra.mxu0 %v440
        %580 = vmatpush.bf16.msra.mxu0 %v439
        %581 = vmatpush.bf16.msra.mxu0 %v438
        %582 = vmatpush.bf16.msra.mxu0 %v437
        %583 = vmatmul.bf16.gmra.mxu0 %v573
        %v584 = vpop.f32.mrf.mxu0
        %v585 = vadd.f32 %v332, %v584
        %v586 = vpop.f32.mrf.mxu0
        %587 = vdwg.mxu0
        %v588 = vxor.u32 %v585, 2147483648
        %v589 = vmul.f32 %v588, 1.442695
        %v590 = vpow.pop %v589
        %v591 = vadd.f32 %v590, 1.0
        %v592 = vrcp.pop %v591
        %v593 = vmul.f32 %v591, %v592
        %v594 = vsub.f32 1.0, %v593
        %v595 = vmul.f32 %v592, %v594
        %v596 = vadd.f32 %v592, %v595
        %vm597 = vweird.f32 %v591
        %vm598 = vweird.f32 %v592
        %vm599 = vmor %vm597, %vm598
        %v600 = vsel %vm599, %v592, %v596
        %v601 = vand.u32 2147483647, %v591
        %vm602 = vcmp.eq.f32.partialorder %v601, 8.507059e+37
        %v603 = vand.u32 %v591, 2147483648
        %v604 = vor.u32 1.1754944e-38, %v603
        %v605 = vsel %vm602, %v604, %v600
        %v606 = vmul.f32 1.0, %v605
        %608 = vrot.lane.b32.xlu0 %v585, 32
        %v609 = vpop.permute.xlu0 %608
        %v611 = vmul.f32 %v606, %v609
        %613 = vrot.lane.b32.xlu0 %v611, 64
        %v614 = vpop.permute.xlu0 %613
        %v616 = vadd.f32 %v585, %v614
        %v617 = vtanh.pop %v616
        %v618 = vsub.f32 1.0, %v606
        %620 = vrot.lane.b32.xlu0 %v617, 96
        %v621 = vpop.permute.xlu0 %620
        %v623 = vmul.f32 %v618, %v621
        %v624 = vmul.f32 %v606, %v499
        %v625 = vadd.f32 %v623, %v624
        %627 = vrot.lane.b32.xlu0 %v625, 96
        %v628 = vpop.permute.xlu0 %627
        %s630 = scalar_lea.vmem %s307, 8
        %631 = vst.msk [vmem:[%s630] sm:$0xff] %vm351, %v628
        %s632 = scalar_lea.vmem %s262, 16 [#allocation5]
        %v633 = vld [vmem:[%s632] sm:$0xff]
        %v634 = vpack.c.bf16 %v564, %v564
        %636 = vrot.lane.b32.xlu0 %v634, 32
        %v637 = vpop.permute.xlu0 %636
        %v639 = vsel %vm351, %v637, 0
        %641 = vmatpush.bf16.msra.mxu0 0
        %642 = vmatpush.bf16.msra.mxu0 0
        %643 = vmatpush.bf16.msra.mxu0 0
        %644 = vmatpush.bf16.msra.mxu0 0
        %645 = vmatpush.bf16.msra.mxu0 0
        %646 = vmatpush.bf16.msra.mxu0 0
        %647 = vmatpush.bf16.msra.mxu0 %v348
        %648 = vmatpush.bf16.msra.mxu0 %v347
        %649 = vmatmul.bf16.gmra.mxu0 %v639
        %v650 = vpop.f32.mrf.mxu0
        %v651 = vadd.f32 0.0, %v650
        %v652 = vpop.f32.mrf.mxu0
        %653 = vdwg.mxu0
        %v654 = vadd.f32 %v633, %v651
        %v655 = vxor.u32 %v654, 2147483648
        %v656 = vmul.f32 %v655, 1.442695
        %v657 = vpow.pop %v656
        %v658 = vadd.f32 %v657, 1.0
        %v659 = vrcp.pop %v658
        %v660 = vmul.f32 %v658, %v659
        %v661 = vsub.f32 1.0, %v660
        %v662 = vmul.f32 %v659, %v661
        %v663 = vadd.f32 %v659, %v662
        %vm664 = vweird.f32 %v658
        %vm665 = vweird.f32 %v659
        %vm666 = vmor %vm664, %vm665
        %v667 = vsel %vm666, %v659, %v663
        %v668 = vand.u32 2147483647, %v658
        %vm669 = vcmp.eq.f32.partialorder %v668, 8.507059e+37
        %v670 = vand.u32 %v658, 2147483648
        %v671 = vor.u32 1.1754944e-38, %v670
        %v672 = vsel %vm669, %v671, %v667
        %v673 = vmul.f32 1.0, %v672
        %v674 = vtanh.pop %v654
        %v675 = vmul.f32 %v673, %v558
        %677 = vrot.lane.b32.xlu0 %v674, 64
        %v678 = vpop.permute.xlu0 %677
        %v680 = vmul.f32 %v673, %v678
        %682 = vrot.lane.b32.xlu0 %v680, 32
        %v683 = vpop.permute.xlu0 %682
        %v685 = vadd.f32 %v675, %v683
        %v686 = vtanh.pop %v685
        %688 = vrot.lane.b32.xlu0 %v686, 64
        %v689 = vpop.permute.xlu0 %688
        %v691 = vmul.f32 %v673, %v689
        %v692 = vmax.f32 %v691, 0.0
        %694 = vrot.lane.b32.xlu0 %v692, 32
        %v695 = vpop.permute.xlu0 %694
        %v697 = vsel %vm351, %v695, %v625
        %v698 = vpack.c.bf16 %v697, %v697
        %v700 = vsel %vm445, %v698, 0
        %702 = vmatpush.bf16.msra.mxu0 0
        %703 = vmatpush.bf16.msra.mxu0 0
        %704 = vmatpush.bf16.msra.mxu0 0
        %705 = vmatpush.bf16.msra.mxu0 0
        %706 = vmatpush.bf16.msra.mxu0 %v440
        %707 = vmatpush.bf16.msra.mxu0 %v439
        %708 = vmatpush.bf16.msra.mxu0 %v438
        %709 = vmatpush.bf16.msra.mxu0 %v437
        %710 = vmatmul.bf16.gmra.mxu0 %v700
        %v711 = vpop.f32.mrf.mxu0
        %v712 = vadd.f32 %v332, %v711
        %v713 = vpop.f32.mrf.mxu0
        %714 = vdwg.mxu0
        %v715 = vxor.u32 %v712, 2147483648
        %v716 = vmul.f32 %v715, 1.442695
        %v717 = vpow.pop %v716
        %v718 = vadd.f32 %v717, 1.0
        %v719 = vrcp.pop %v718
        %v720 = vmul.f32 %v718, %v719
        %v721 = vsub.f32 1.0, %v720
        %v722 = vmul.f32 %v719, %v721
        %v723 = vadd.f32 %v719, %v722
        %vm724 = vweird.f32 %v718
        %vm725 = vweird.f32 %v719
        %vm726 = vmor %vm724, %vm725
        %v727 = vsel %vm726, %v719, %v723
        %v728 = vand.u32 2147483647, %v718
        %vm729 = vcmp.eq.f32.partialorder %v728, 8.507059e+37
        %v730 = vand.u32 %v718, 2147483648
        %v731 = vor.u32 1.1754944e-38, %v730
        %v732 = vsel %vm729, %v731, %v727
        %v733 = vmul.f32 1.0, %v732
        %735 = vrot.lane.b32.xlu0 %v712, 32
        %v736 = vpop.permute.xlu0 %735
        %v738 = vmul.f32 %v733, %v736
        %740 = vrot.lane.b32.xlu0 %v738, 64
        %v741 = vpop.permute.xlu0 %740
        %v743 = vadd.f32 %v712, %v741
        %v744 = vtanh.pop %v743
        %v745 = vsub.f32 1.0, %v733
        %747 = vrot.lane.b32.xlu0 %v744, 96
        %v748 = vpop.permute.xlu0 %747
        %v750 = vmul.f32 %v745, %v748
        %v751 = vmul.f32 %v733, %v625
        %v752 = vadd.f32 %v750, %v751
        %754 = vrot.lane.b32.xlu0 %v752, 96
        %v755 = vpop.permute.xlu0 %754
        %s757 = scalar_lea.vmem %s307, 16
        %758 = vst.msk [vmem:[%s757] sm:$0xff] %vm351, %v755
        %s759 = scalar_lea.vmem %s262, 24 [#allocation5]
        %v760 = vld [vmem:[%s759] sm:$0xff]
        %v761 = vpack.c.bf16 %v691, %v691
        %763 = vrot.lane.b32.xlu0 %v761, 32
        %v764 = vpop.permute.xlu0 %763
        %v766 = vsel %vm351, %v764, 0
        %768 = vmatpush.bf16.msra.mxu0 0
        %769 = vmatpush.bf16.msra.mxu0 0
        %770 = vmatpush.bf16.msra.mxu0 0
        %771 = vmatpush.bf16.msra.mxu0 0
        %772 = vmatpush.bf16.msra.mxu0 0
        %773 = vmatpush.bf16.msra.mxu0 0
        %774 = vmatpush.bf16.msra.mxu0 %v348
        %775 = vmatpush.bf16.msra.mxu0 %v347
        %776 = vmatmul.bf16.gmra.mxu0 %v766
        %v777 = vpop.f32.mrf.mxu0
        %v778 = vadd.f32 0.0, %v777
        %v779 = vpop.f32.mrf.mxu0
        %780 = vdwg.mxu0
        %v781 = vadd.f32 %v760, %v778
        %v782 = vxor.u32 %v781, 2147483648
        %v783 = vmul.f32 %v782, 1.442695
        %v784 = vpow.pop %v783
        %v785 = vadd.f32 %v784, 1.0
        %v786 = vrcp.pop %v785
        %v787 = vmul.f32 %v785, %v786
        %v788 = vsub.f32 1.0, %v787
        %v789 = vmul.f32 %v786, %v788
        %v790 = vadd.f32 %v786, %v789
        %vm791 = vweird.f32 %v785
        %vm792 = vweird.f32 %v786
        %vm793 = vmor %vm791, %vm792
        %v794 = vsel %vm793, %v786, %v790
        %v795 = vand.u32 2147483647, %v785
        %vm796 = vcmp.eq.f32.partialorder %v795, 8.507059e+37
        %v797 = vand.u32 %v785, 2147483648
        %v798 = vor.u32 1.1754944e-38, %v797
        %v799 = vsel %vm796, %v798, %v794
        %v800 = vmul.f32 1.0, %v799
        %v801 = vtanh.pop %v781
        %v802 = vmul.f32 %v800, %v685
        %804 = vrot.lane.b32.xlu0 %v801, 64
        %v805 = vpop.permute.xlu0 %804
        %v807 = vmul.f32 %v800, %v805
        %809 = vrot.lane.b32.xlu0 %v807, 32
        %v810 = vpop.permute.xlu0 %809
        %v812 = vadd.f32 %v802, %v810
        %v813 = vtanh.pop %v812
        %815 = vrot.lane.b32.xlu0 %v813, 64
        %v816 = vpop.permute.xlu0 %815
        %v818 = vmul.f32 %v800, %v816
        %v819 = vmax.f32 %v818, 0.0
        %821 = vrot.lane.b32.xlu0 %v819, 32
        %v822 = vpop.permute.xlu0 %821
        %v824 = vsel %vm351, %v822, %v752
        %v825 = vpack.c.bf16 %v824, %v824
        %v827 = vsel %vm445, %v825, 0
        %829 = vmatpush.bf16.msra.mxu0 0
        %830 = vmatpush.bf16.msra.mxu0 0
        %831 = vmatpush.bf16.msra.mxu0 0
        %832 = vmatpush.bf16.msra.mxu0 0
        %833 = vmatpush.bf16.msra.mxu0 %v440
        %834 = vmatpush.bf16.msra.mxu0 %v439
        %835 = vmatpush.bf16.msra.mxu0 %v438
        %836 = vmatpush.bf16.msra.mxu0 %v437
        %837 = vmatmul.bf16.gmra.mxu0 %v827
        %v838 = vpop.f32.mrf.mxu0
        %v839 = vadd.f32 %v332, %v838
        %v840 = vpop.f32.mrf.mxu0
        %841 = vdwg.mxu0
        %v842 = vxor.u32 %v839, 2147483648
        %v843 = vmul.f32 %v842, 1.442695
        %v844 = vpow.pop %v843
        %v845 = vadd.f32 %v844, 1.0
        %v846 = vrcp.pop %v845
        %v847 = vmul.f32 %v845, %v846
        %v848 = vsub.f32 1.0, %v847
        %v849 = vmul.f32 %v846, %v848
        %v850 = vadd.f32 %v846, %v849
        %vm851 = vweird.f32 %v845
        %vm852 = vweird.f32 %v846
        %vm853 = vmor %vm851, %vm852
        %v854 = vsel %vm853, %v846, %v850
        %v855 = vand.u32 2147483647, %v845
        %vm856 = vcmp.eq.f32.partialorder %v855, 8.507059e+37
        %v857 = vand.u32 %v845, 2147483648
        %v858 = vor.u32 1.1754944e-38, %v857
        %v859 = vsel %vm856, %v858, %v854
        %v860 = vmul.f32 1.0, %v859
        %862 = vrot.lane.b32.xlu0 %v839, 32
        %v863 = vpop.permute.xlu0 %862
        %v865 = vmul.f32 %v860, %v863
        %867 = vrot.lane.b32.xlu0 %v865, 64
        %v868 = vpop.permute.xlu0 %867
        %v870 = vadd.f32 %v839, %v868
        %v871 = vtanh.pop %v870
        %v872 = vsub.f32 1.0, %v860
        %874 = vrot.lane.b32.xlu0 %v871, 96
        %v875 = vpop.permute.xlu0 %874
        %v877 = vmul.f32 %v872, %v875
        %v878 = vmul.f32 %v860, %v752
        %v879 = vadd.f32 %v877, %v878
        %881 = vrot.lane.b32.xlu0 %v879, 96
        %v882 = vpop.permute.xlu0 %881
        %s884 = scalar_lea.vmem %s307, 24
        %885 = vst.msk [vmem:[%s884] sm:$0xff] %vm351, %v882
        %887 = vrot.lane.b32.xlu0 %v818, 32
        %v888 = vpop.permute.xlu0 %887
        %890 = vst.msk [vmem:[#allocation2] sm:$0xff] %vm351, %v888
        %892 = vrot.lane.b32.xlu0 %v812, 96
        %v893 = vpop.permute.xlu0 %892
        %895 = vst.msk [vmem:[#allocation3] sm:$0xff] %vm351, %v893
        %896 = vst.msk [vmem:[#allocation4] sm:$0xff] %vm351, %v882
        %v897 = vld [vmem:[%s307] sm:$0xff]
        %v898 = vld [vmem:[%s307 + $0x8] sm:$0xff]
        %v899 = vld [vmem:[%s307 + $0x10] sm:$0xff]
        %v900 = vld [vmem:[%s307 + $0x18] sm:$0xff]
        %v901 = vmax.f32 %v897, 0.0
        %v902 = vmax.f32 %v898, 0.0
        %v903 = vmax.f32 %v899, 0.0
        %v904 = vmax.f32 %v900, 0.0
        %v905 = vsel %vm351, %v901, 0.0
        %906 = vadd.xlane.f32.xlu0 %v905
        %v907 = vpop.xlane.xlu0 %906
        %v908 = vsel %vm351, %v902, 0.0
        %909 = vadd.xlane.f32.xlu0 %v908
        %v910 = vpop.xlane.xlu0 %909
        %v911 = vsel %vm351, %v903, 0.0
        %912 = vadd.xlane.f32.xlu0 %v911
        %v913 = vpop.xlane.xlu0 %912
        %v914 = vsel %vm351, %v904, 0.0
        %915 = vadd.xlane.f32.xlu0 %v914
        %v916 = vpop.xlane.xlu0 %915
        %v917 = vrcp.pop 32.0
        %v918 = vmul.f32 32.0, %v917
        %v919 = vsub.f32 1.0, %v918
        %v920 = vmul.f32 %v917, %v919
        %v921 = vadd.f32 %v917, %v920
        %vm922 = vweird.f32 %v917
        %v923 = vsel %vm922, %v917, %v921
        %v924 = vmul.f32 %v907, %v923
        %v925 = vmul.f32 %v910, %v923
        %v926 = vmul.f32 %v913, %v923
        %v927 = vmul.f32 %v916, %v923
        %v928 = vsub.f32 %v901, %v924
        %v929 = vsub.f32 %v902, %v925
        %v930 = vsub.f32 %v903, %v926
        %v931 = vsub.f32 %v904, %v927
        %v932 = vmul.f32 %v928, %v928
        %v933 = vmul.f32 %v929, %v929
        %v934 = vmul.f32 %v930, %v930
        %v935 = vmul.f32 %v931, %v931
        %v936 = vsel %vm351, %v932, 0.0
        %937 = vadd.xlane.f32.xlu0 %v936
        %v938 = vpop.xlane.xlu0 %937
        %v939 = vsel %vm351, %v933, 0.0
        %940 = vadd.xlane.f32.xlu0 %v939
        %v941 = vpop.xlane.xlu0 %940
        %v942 = vsel %vm351, %v934, 0.0
        %943 = vadd.xlane.f32.xlu0 %v942
        %v944 = vpop.xlane.xlu0 %943
        %v945 = vsel %vm351, %v935, 0.0
        %946 = vadd.xlane.f32.xlu0 %v945
        %v947 = vpop.xlane.xlu0 %946
        %v948 = vmul.f32 %v938, %v923
        %v949 = vmul.f32 %v941, %v923
        %v950 = vmul.f32 %v944, %v923
        %v951 = vmul.f32 %v947, %v923
        %v952 = vadd.f32 %v948, 1e-05
        %v953 = vadd.f32 %v949, 1e-05
        %v954 = vadd.f32 %v950, 1e-05
        %v955 = vadd.f32 %v951, 1e-05
        %v956 = vrsqrt.pop %v952
        %v957 = vmul.f32 %v956, %v952
        %v958 = vmul.f32 %v957, %v956
        %v959 = vmul.f32 0.5, %v958
        %v960 = vsub.f32 1.5, %v959
        %v961 = vmul.f32 %v956, %v960
        %vm962 = vweird.f32 %v952
        %vm963 = vweird.f32 %v956
        %vm964 = vmor %vm962, %vm963
        %v965 = vsel %vm964, %v956, %v961
        %v966 = vrsqrt.pop %v953
        %v967 = vmul.f32 %v966, %v953
        %v968 = vmul.f32 %v967, %v966
        %v969 = vmul.f32 0.5, %v968
        %v970 = vsub.f32 1.5, %v969
        %v971 = vmul.f32 %v966, %v970
        %vm972 = vweird.f32 %v953
        %vm973 = vweird.f32 %v966
        %vm974 = vmor %vm972, %vm973
        %v975 = vsel %vm974, %v966, %v971
        %v976 = vrsqrt.pop %v954
        %v977 = vmul.f32 %v976, %v954
        %v978 = vmul.f32 %v977, %v976
        %v979 = vmul.f32 0.5, %v978
        %v980 = vsub.f32 1.5, %v979
        %v981 = vmul.f32 %v976, %v980
        %vm982 = vweird.f32 %v954
        %vm983 = vweird.f32 %v976
        %vm984 = vmor %vm982, %vm983
        %v985 = vsel %vm984, %v976, %v981
        %v986 = vrsqrt.pop %v955
        %v987 = vmul.f32 %v986, %v955
        %v988 = vmul.f32 %v987, %v986
        %v989 = vmul.f32 0.5, %v988
        %v990 = vsub.f32 1.5, %v989
        %v991 = vmul.f32 %v986, %v990
        %vm992 = vweird.f32 %v955
        %vm993 = vweird.f32 %v986
        %vm994 = vmor %vm992, %vm993
        %v995 = vsel %vm994, %v986, %v991
        %v996 = vmul.f32 %v928, %v965
        %v997 = vmul.f32 %v929, %v975
        %v998 = vmul.f32 %v930, %v985
        %v999 = vmul.f32 %v931, %v995
        %v1000 = vld [vmem:[%s4] sm:$0x1]
        %v1002 = vperm.slane %v1000, 0
        %v1004 = vmul.f32 %v996, %v1002
        %v1005 = vmul.f32 %v997, %v1002
        %v1006 = vmul.f32 %v998, %v1002
        %v1007 = vmul.f32 %v999, %v1002
        %v1008 = vld [vmem:[%s5] sm:$0x1]
        %v1010 = vperm.slane %v1008, 0
        %v1012 = vadd.f32 %v1004, %v1010
        %v1013 = vadd.f32 %v1005, %v1010
        %v1014 = vadd.f32 %v1006, %v1010
        %v1015 = vadd.f32 %v1007, %v1010
        %1016 = vst.msk [vmem:[%s307] sm:$0xff] %vm351, %v1012
        %1017 = vst.msk [vmem:[%s307 + $0x8] sm:$0xff] %vm351, %v1013
        %1018 = vst.msk [vmem:[%s307 + $0x10] sm:$0xff] %vm351, %v1014
        %1019 = vst.msk [vmem:[%s307 + $0x18] sm:$0xff] %vm351, %v1015
        %s1020 = smul.u32 4, %s21
        %p1021 = scmp.lt.s32.totalorder %s1020, 7
        %s1022 = scalar_select %p1021, %s1020, 7
        %s1023 = smul.addr %s1022, 8
        %s1024 = scalar_lea.vmem %s6, %s1023
        // Predicated region
        $region61: #{tpu_custom_call.1} parent=43 // pred_check
          %p1025 = pneg %p170
        $region62: #{tpu_custom_call.1} parent=43 // pred_check_branch
          %1027 = sbr.rel (%p1025) target = $region64
        $region63: #{tpu_custom_call.1} parent=43 // pred_region
          %s1028 = smul.u32 4, %s21
        $region64: #{tpu_custom_call.1} parent=43 // pred_fallthru
          _
      $region44: #{tpu_custom_call.1} parent=5 // pred_fallthru
        _
      %p1029 = scmp.le.s32.totalorder 2, %s16
      // Predicated region
      $region65: #{tpu_custom_call.1} parent=5 // pred_check
        %p1030 = pneg %p1029
      $region66: #{tpu_custom_call.1} parent=5 // pred_check_branch
        %1032 = sbr.rel (%p1030) target = $region68
      $region67: #{tpu_custom_call.1} parent=5 // pred_region
        %s1033 = ssub.s32 %s16, 2
        // Predicated region
        $region69: #{tpu_custom_call.1} parent=67 // pred_check
          %p1034 = pneg %p176
        $region70: #{tpu_custom_call.1} parent=67 // pred_check_branch
          %1036 = sbr.rel (%p1034) target = $region72
        $region71: #{tpu_custom_call.1} parent=67 // pred_region
          %s1037 = smul.u32 4, %s22
          %p1038 = scmp.lt.s32.totalorder %s1037, 7
          %s1039 = scalar_select %p1038, %s1037, 7
          %s1040 = smul.addr %s1039, 8
          %s1041 = scalar_lea.vmem %s6, %s1040
        $region72: #{tpu_custom_call.1} parent=67 // pred_fallthru
          _
      $region68: #{tpu_custom_call.1} parent=5 // pred_fallthru
        _
    $region6: #{tpu_custom_call.1} parent=1 // loop_footer
      %s20 = sadd.s32 1, %s16
    $region7: #{tpu_custom_call.1} parent=1 // loop_footer_branch
      %15 = sbr.rel target = $region3
    $region8: #{tpu_custom_call.1} parent=1 // loop_exit
      _
    %1042 = vsyncpa [#allocation6], 1
    %s1043 = scalar_lea.sflag [#allocation6], 1
    %1044 = vsyncpa %s1043, 1
    %1045 = vsyncpa [#allocation8], 1

</llo_original>
